<compile_context>
chip_gen: v7x
topology: tpu7x:2x2x1
jax: 0.10.0
libtpu: 0.0.40
codegen_flags: <defaults>
</compile_context>

<pallas_src>
import jax
import jax.numpy as jnp
from jax.experimental import pallas as pl
from jax.experimental.pallas import tpu as pltpu

# ---------------- module configuration ----------------
VERT_IMG_HGT = 1
TIME_STEP = 8
INP_NUM = 2              # inp_lr_flag == 'both'
OUTPUT_NUM = 2           # lf_rt_tag == 'both'
FLAG_REACH_USE = True
HID = 32                 # lstm_hidden_units
NUM_LAYERS = 2           # extra hidden fc layers
FLAG_BATCH_NORM = True
OUT_USE_MID = False
BATCH = 8                # batch_size of one module.forward call
BN_EPS = 1e-5

if FLAG_REACH_USE:
    if VERT_IMG_HGT > 1:
        INPUT_SIZE = int(VERT_IMG_HGT * ((TIME_STEP - 1) * INP_NUM) + 1)
    else:
        INPUT_SIZE = int(VERT_IMG_HGT * ((TIME_STEP - 1) * INP_NUM + 1))
else:
    INPUT_SIZE = int(VERT_IMG_HGT * ((TIME_STEP - 1) * INP_NUM))

OUT_DIM = (1 * OUTPUT_NUM) if OUT_USE_MID else (VERT_IMG_HGT * OUTPUT_NUM)

# ---------------- packed block-diagonal slab layout ----------------
LANE_GROUPS = 4                          # groups packed across lanes
LANES = LANE_GROUPS * HID                # 128
W1_ROWS = LANE_GROUPS * HID              # 128 rows reserved for fc_in blocks
W_ROWS = W1_ROWS + (NUM_LAYERS + 1) * LANES   # 512
V_ROWS = 8                               # gammas/betas + b_out (lane-packed)

assert INPUT_SIZE <= HID
assert LANE_GROUPS * OUT_DIM <= LANES


# ---------------- Pallas kernel ----------------
def _bn_relu(h, gb, bsz, gamma, beta):
    # Train-mode BatchNorm1d + ReLU with exact per-group batch statistics:
    # each sublane-group of 8 rows and each 32-lane block is one group.
    # Two-pass (centered, biased) variance matches PyTorch; rsqrt -> EUP slot.
    h3 = h.reshape(gb, bsz, LANES)
    mean = jnp.mean(h3, axis=1, keepdims=True)                 # (gb,1,LANES)
    cent = h3 - mean
    var = jnp.mean(cent * cent, axis=1, keepdims=True)
    scale = gamma * jax.lax.rsqrt(var + BN_EPS)
    out = jnp.maximum(cent * scale + beta, 0.0)
    return out.reshape(gb * bsz, LANES)


def mlp_kernel(x_ref, w_ref, v_ref, o_ref):
    # x_ref: (GB, 4, BATCH, INPUT_SIZE)  -- GB lane-quads of 4 groups each
    # w_ref: (W_ROWS, LANES)             -- block-diag weight slab (resident)
    # v_ref: (V_ROWS, LANES)             -- gamma/beta (lane-tiled) + b_out
    # o_ref: (GB, BATCH, LANES)          -- lane-dense output
    gb, lq, bsz, f = x_ref.shape         # all static
    m = gb * bsz

    # fc_in: sum of 4 small dots (K=INPUT_SIZE). Row block q of the slab is
    # zero outside lanes [q*HID,(q+1)*HID), so the sum lane-packs the 4 groups
    # without any cross-lane data movement.
    h = jnp.dot(x_ref[:, 0:1, :, :].reshape(m, f), w_ref[0:f, :],
                preferred_element_type=jnp.float32)
    for q in range(1, lq):               # static unroll
        h = h + jnp.dot(x_ref[:, q:q + 1, :, :].reshape(m, f),
                        w_ref[q * HID:q * HID + f, :],
                        preferred_element_type=jnp.float32)
    h = _bn_relu(h, gb, bsz, v_ref[0:1, :], v_ref[1:2, :])

    for i in range(NUM_LAYERS):          # static unroll
        r = W1_ROWS + i * LANES
        h = jnp.dot(h, w_ref[r:r + LANES, :],
                    preferred_element_type=jnp.float32)
        h = _bn_relu(h, gb, bsz,
                     v_ref[2 * i + 2:2 * i + 3, :],
                     v_ref[2 * i + 3:2 * i + 4, :])

    r = W1_ROWS + NUM_LAYERS * LANES
    out = (jnp.dot(h, w_ref[r:r + LANES, :],
                   preferred_element_type=jnp.float32)
           + v_ref[2 * NUM_LAYERS + 2:2 * NUM_LAYERS + 3, :])
    o_ref[...] = out.reshape(gb, bsz, LANES)


def baseline_ann_forward(x_groups, packed_params, group_block=16):
    """x_groups: (G, BATCH, INPUT_SIZE). Each group is one independent
    module.forward call (BatchNorm batch stats are per group, as in PyTorch).
    group_block: lane-quads per grid step (16 -> M=128 rows; 32 -> M=256 on
    v6e/v7x)."""
    w_slab, v_slab = packed_params
    g_num, bsz, f = x_groups.shape
    assert bsz == BATCH and f == INPUT_SIZE

    quad = LANE_GROUPS
    g4 = -(-g_num // quad)                       # lane-quads (ceil)
    gb = max(1, min(group_block, g4))
    g4_pad = -(-g4 // gb) * gb
    g_pad = g4_pad * quad
    if g_pad != g_num:
        # zero groups are harmless (var=0 -> finite rsqrt(eps)); discarded below
        x_groups = jnp.concatenate(
            [x_groups, jnp.zeros((g_pad - g_num, bsz, f), x_groups.dtype)],
            axis=0)
    xq = x_groups.reshape(g4_pad, quad, bsz, f)  # free (leading-dim) reshape

    steps = g4_pad // gb
    m_rows = gb * bsz
    flops = int(steps * 2 * m_rows
                * (quad * f * LANES + (NUM_LAYERS + 1) * LANES * LANES))
    transcendentals = int(steps * (NUM_LAYERS + 1) * gb * LANES)
    bytes_accessed = int(4 * (g4_pad * quad * bsz * f + w_slab.size
                              + v_slab.size + g4_pad * bsz * LANES))

    out = pl.pallas_call(
        mlp_kernel,
        out_shape=jax.ShapeDtypeStruct((g4_pad, bsz, LANES), jnp.float32),
        grid=(steps,),
        in_specs=[
            pl.BlockSpec((gb, quad, bsz, f), lambda s: (s, 0, 0, 0)),   # x
            pl.BlockSpec((W_ROWS, LANES), lambda s: (0, 0)),            # W slab
            pl.BlockSpec((V_ROWS, LANES), lambda s: (0, 0)),            # vec slab
        ],
        out_specs=pl.BlockSpec((gb, bsz, LANES), lambda s: (s, 0, 0)),
        compiler_params=pltpu.CompilerParams(
            dimension_semantics=("parallel",)),
        cost_estimate=pl.CostEstimate(
            flops=flops, transcendentals=transcendentals,
            bytes_accessed=bytes_accessed),
    )(xq, w_slab, v_slab)

    # Un-interleave: group (4*j + q) lives at lanes [q*OUT_DIM, (q+1)*OUT_DIM).
    o = out[:, :, :quad * OUT_DIM]                            # (g4_pad, 8, 8)
    o = o.reshape(g4_pad, bsz, quad, OUT_DIM)
    o = jnp.transpose(o, (0, 2, 1, 3)).reshape(g4_pad * quad, bsz, OUT_DIM)
    return o[:g_num]


# ---------------- deterministic parameter construction ----------------
def make_params(key):
    ks = jax.random.split(key, 6)
    s_in = 1.0 / jnp.sqrt(INPUT_SIZE)
    s_h = 1.0 / jnp.sqrt(HID)
    # Linear weights stored pre-transposed: (in, out)
    w_in = jax.random.uniform(ks[0], (INPUT_SIZE, HID), jnp.float32, -s_in, s_in)
    b_in = jax.random.uniform(ks[1], (1, HID), jnp.float32, -s_in, s_in)
    g1 = jnp.ones((1, HID), jnp.float32)
    be1 = jnp.zeros((1, HID), jnp.float32)
    w_h = jax.random.uniform(ks[2], (NUM_LAYERS, HID, HID), jnp.float32, -s_h, s_h)
    b_h = jax.random.uniform(ks[3], (NUM_LAYERS, 1, HID), jnp.float32, -s_h, s_h)
    g_h = jnp.ones((NUM_LAYERS, 1, HID), jnp.float32)
    be_h = jnp.zeros((NUM_LAYERS, 1, HID), jnp.float32)
    w_out = jax.random.uniform(ks[4], (HID, OUT_DIM), jnp.float32, -s_h, s_h)
    b_out = jax.random.uniform(ks[5], (1, OUT_DIM), jnp.float32, -s_h, s_h)
    return (w_in, b_in, g1, be1, w_h, b_h, g_h, be_h, w_out, b_out)


def pack_params(raw):
    (w_in, b_in, g1, be1, w_h, b_h, g_h, be_h, w_out, b_out) = raw
    w_slab = jnp.zeros((W_ROWS, LANES), jnp.float32)
    # fc_in: lane-block q uses rows [q*HID, q*HID+INPUT_SIZE), lanes [q*HID,(q+1)*HID)
    for q in range(LANE_GROUPS):
        w_slab = w_slab.at[q * HID:q * HID + INPUT_SIZE,
                           q * HID:(q + 1) * HID].set(w_in)
    # hidden layers: 128x128 block-diagonal (4 copies of the 32x32 matrix)
    for i in range(NUM_LAYERS):
        r = W1_ROWS + i * LANES
        for q in range(LANE_GROUPS):
            w_slab = w_slab.at[r + q * HID:r + (q + 1) * HID,
                               q * HID:(q + 1) * HID].set(w_h[i])
    # fc_out: group q's OUT_DIM columns land on adjacent lanes [q*OUT_DIM, ...)
    r = W1_ROWS + NUM_LAYERS * LANES
    for q in range(LANE_GROUPS):
        w_slab = w_slab.at[r + q * HID:r + (q + 1) * HID,
                           q * OUT_DIM:(q + 1) * OUT_DIM].set(w_out)

    def tile_hid(vec_1xh):                    # (1,HID) -> (LANES,)
        return jnp.tile(vec_1xh[0], LANE_GROUPS)

    v_slab = jnp.zeros((V_ROWS, LANES), jnp.float32)
    v_slab = v_slab.at[0, :].set(tile_hid(g1))
    v_slab = v_slab.at[1, :].set(tile_hid(be1))
    for i in range(NUM_LAYERS):
        v_slab = v_slab.at[2 * i + 2, :].set(tile_hid(g_h[i]))
        v_slab = v_slab.at[2 * i + 3, :].set(tile_hid(be_h[i]))
    bo = jnp.zeros((LANES,), jnp.float32)
    bo = bo.at[:LANE_GROUPS * OUT_DIM].set(jnp.tile(b_out[0], LANE_GROUPS))
    v_slab = v_slab.at[2 * NUM_LAYERS + 2, :].set(bo)
    # b_in / b_h are intentionally NOT packed: a bias added before a
    # train-mode BatchNorm is exactly cancelled by the mean subtraction.
    # TODO(synk): eval-mode BN (running stats) would need the biases re-packed.
    return w_slab, v_slab


# ---------------- pure-JAX (torch-faithful) reference ----------------
def reference_forward(x, raw):
    # One batch; biases kept, two-pass biased variance — matches PyTorch.
    (w_in, b_in, g1, be1, w_h, b_h, g_h, be_h, w_out, b_out) = raw

    def bn_relu(h, g, b):
        m = jnp.mean(h, axis=0, keepdims=True)
        v = jnp.mean((h - m) ** 2, axis=0, keepdims=True)
        return jnp.maximum((h - m) / jnp.sqrt(v + BN_EPS) * g + b, 0.0)

    h = bn_relu(x @ w_in + b_in, g1, be1)
    for i in range(NUM_LAYERS):
        h = bn_relu(h @ w_h[i] + b_h[i], g_h[i], be_h[i])
    return h @ w_out + b_out


if __name__ == "__main__":
    key = jax.random.PRNGKey(0)
    kx, kp = jax.random.split(key)

    # 128 independent forward calls (batch 8 each): 32 lane-quads, 16 quads
    # per step -> M=128-row matmuls, grid of 2 parallel steps.
    NUM_GROUPS = 128
    x = jax.random.normal(kx, (NUM_GROUPS, BATCH, INPUT_SIZE), jnp.float32)
    raw = make_params(kp)
    packed = pack_params(raw)

    out = baseline_ann_forward(x, packed, group_block=16)
    out = jax.block_until_ready(out)

    ref = jax.vmap(lambda xg: reference_forward(xg, raw))(x)
    assert out.shape == (NUM_GROUPS, BATCH, OUT_DIM)
    assert jnp.allclose(out, ref, atol=1e-4, rtol=1e-4), "mismatch vs reference"
    print("KERNEL_OK")
</pallas_src>

<mosaic_0001>
module attributes {stable_mosaic.version = 11 : i64} {
  func.func @mlp_kernel(%arg0: i32, %arg1: memref<16x4x8x15xf32, #tpu.memory_space<vmem>>, %arg2: memref<512x128xf32, #tpu.memory_space<vmem>>, %arg3: memref<8x128xf32, #tpu.memory_space<vmem>>, %arg4: memref<16x8x128xf32, #tpu.memory_space<vmem>>) attributes {dimension_semantics = [#tpu.dimension_semantics<parallel>], iteration_bounds = array<i64: 2>, scalar_prefetch = 0 : i64, scratch_operands = 0 : i64, tpu.core_type = #tpu.core_type<tc>, window_params = [{transform_indices = @transform_0, window_bounds = array<i64: 16, 4, 8, 15>}, {pipeline_mode = #tpu.pipeline_mode<synchronous>, transform_indices = @transform_1, window_bounds = array<i64: 512, 128>}, {pipeline_mode = #tpu.pipeline_mode<synchronous>, transform_indices = @transform_2, window_bounds = array<i64: 8, 128>}, {transform_indices = @transform_3, window_bounds = array<i64: 16, 8, 128>}]} {
    %c0 = arith.constant 0 : index
    %c0_0 = arith.constant 0 : index
    %c0_1 = arith.constant 0 : index
    %c0_2 = arith.constant 0 : index
    %0 = vector.load %arg1[%c0, %c0_0, %c0_1, %c0_2] : memref<16x4x8x15xf32, #tpu.memory_space<vmem>>, vector<16x1x8x15xf32>
    %1 = vector.shape_cast %0 : vector<16x1x8x15xf32> to vector<128x15xf32>
    %c0_3 = arith.constant 0 : index
    %c0_4 = arith.constant 0 : index
    %2 = vector.load %arg2[%c0_3, %c0_4] : memref<512x128xf32, #tpu.memory_space<vmem>>, vector<15x128xf32>
    %cst = arith.constant dense<0.000000e+00> : vector<128x128xf32>
    %3 = tpu.matmul %1, %2, %cst {dimension_numbers = #tpu.dot_dimension_numbers<[1], [0], [0], [1], [0, 0, 1, 1], [], []>} : vector<128x15xf32>, vector<15x128xf32>, vector<128x128xf32> -> vector<128x128xf32>
    %c0_5 = arith.constant 0 : index
    %c1 = arith.constant 1 : index
    %c0_6 = arith.constant 0 : index
    %c0_7 = arith.constant 0 : index
    %4 = vector.load %arg1[%c0_5, %c1, %c0_6, %c0_7] : memref<16x4x8x15xf32, #tpu.memory_space<vmem>>, vector<16x1x8x15xf32>
    %5 = vector.shape_cast %4 : vector<16x1x8x15xf32> to vector<128x15xf32>
    %c32 = arith.constant 32 : index
    %c0_8 = arith.constant 0 : index
    %6 = vector.load %arg2[%c32, %c0_8] : memref<512x128xf32, #tpu.memory_space<vmem>>, vector<15x128xf32>
    %cst_9 = arith.constant dense<0.000000e+00> : vector<128x128xf32>
    %7 = tpu.matmul %5, %6, %cst_9 {dimension_numbers = #tpu.dot_dimension_numbers<[1], [0], [0], [1], [0, 0, 1, 1], [], []>} : vector<128x15xf32>, vector<15x128xf32>, vector<128x128xf32> -> vector<128x128xf32>
    %8 = arith.addf %3, %7 : vector<128x128xf32>
    %c0_10 = arith.constant 0 : index
    %c2 = arith.constant 2 : index
    %c0_11 = arith.constant 0 : index
    %c0_12 = arith.constant 0 : index
    %9 = vector.load %arg1[%c0_10, %c2, %c0_11, %c0_12] : memref<16x4x8x15xf32, #tpu.memory_space<vmem>>, vector<16x1x8x15xf32>
    %10 = vector.shape_cast %9 : vector<16x1x8x15xf32> to vector<128x15xf32>
    %c64 = arith.constant 64 : index
    %c0_13 = arith.constant 0 : index
    %11 = vector.load %arg2[%c64, %c0_13] : memref<512x128xf32, #tpu.memory_space<vmem>>, vector<15x128xf32>
    %cst_14 = arith.constant dense<0.000000e+00> : vector<128x128xf32>
    %12 = tpu.matmul %10, %11, %cst_14 {dimension_numbers = #tpu.dot_dimension_numbers<[1], [0], [0], [1], [0, 0, 1, 1], [], []>} : vector<128x15xf32>, vector<15x128xf32>, vector<128x128xf32> -> vector<128x128xf32>
    %13 = arith.addf %8, %12 : vector<128x128xf32>
    %c0_15 = arith.constant 0 : index
    %c3 = arith.constant 3 : index
    %c0_16 = arith.constant 0 : index
    %c0_17 = arith.constant 0 : index
    %14 = vector.load %arg1[%c0_15, %c3, %c0_16, %c0_17] : memref<16x4x8x15xf32, #tpu.memory_space<vmem>>, vector<16x1x8x15xf32>
    %15 = vector.shape_cast %14 : vector<16x1x8x15xf32> to vector<128x15xf32>
    %c96 = arith.constant 96 : index
    %c0_18 = arith.constant 0 : index
    %16 = vector.load %arg2[%c96, %c0_18] : memref<512x128xf32, #tpu.memory_space<vmem>>, vector<15x128xf32>
    %cst_19 = arith.constant dense<0.000000e+00> : vector<128x128xf32>
    %17 = tpu.matmul %15, %16, %cst_19 {dimension_numbers = #tpu.dot_dimension_numbers<[1], [0], [0], [1], [0, 0, 1, 1], [], []>} : vector<128x15xf32>, vector<15x128xf32>, vector<128x128xf32> -> vector<128x128xf32>
    %18 = arith.addf %13, %17 : vector<128x128xf32>
    %c0_20 = arith.constant 0 : index
    %c0_21 = arith.constant 0 : index
    %19 = vector.load %arg3[%c0_20, %c0_21] : memref<8x128xf32, #tpu.memory_space<vmem>>, vector<1x128xf32>
    %c1_22 = arith.constant 1 : index
    %c0_23 = arith.constant 0 : index
    %20 = vector.load %arg3[%c1_22, %c0_23] : memref<8x128xf32, #tpu.memory_space<vmem>>, vector<1x128xf32>
    %21 = vector.shape_cast %18 : vector<128x128xf32> to vector<16x8x128xf32>
    %cst_24 = arith.constant dense<0.000000e+00> : vector<16x128xf32>
    %22 = vector.multi_reduction <add>, %21, %cst_24 [1] : vector<16x8x128xf32> to vector<16x128xf32>
    %23 = vector.shape_cast %22 : vector<16x128xf32> to vector<16x1x128xf32>
    %cst_25 = arith.constant 8.000000e+00 : f32
    %24 = vector.broadcast %cst_25 : f32 to vector<16x1x128xf32>
    %25 = arith.divf %23, %24 : vector<16x1x128xf32>
    %26 = vector.broadcast %25 : vector<16x1x128xf32> to vector<16x8x128xf32>
    %27 = arith.subf %21, %26 : vector<16x8x128xf32>
    %28 = arith.mulf %27, %27 : vector<16x8x128xf32>
    %cst_26 = arith.constant dense<0.000000e+00> : vector<16x128xf32>
    %29 = vector.multi_reduction <add>, %28, %cst_26 [1] : vector<16x8x128xf32> to vector<16x128xf32>
    %30 = vector.shape_cast %29 : vector<16x128xf32> to vector<16x1x128xf32>
    %cst_27 = arith.constant 8.000000e+00 : f32
    %31 = vector.broadcast %cst_27 : f32 to vector<16x1x128xf32>
    %32 = arith.divf %30, %31 : vector<16x1x128xf32>
    %cst_28 = arith.constant 9.99999974E-6 : f32
    %33 = vector.broadcast %cst_28 : f32 to vector<16x1x128xf32>
    %34 = arith.addf %32, %33 : vector<16x1x128xf32>
    %35 = math.rsqrt %34 : vector<16x1x128xf32>
    %36 = vector.shape_cast %19 : vector<1x128xf32> to vector<1x1x128xf32>
    %37 = vector.broadcast %36 : vector<1x1x128xf32> to vector<16x1x128xf32>
    %38 = arith.mulf %37, %35 : vector<16x1x128xf32>
    %39 = vector.broadcast %38 : vector<16x1x128xf32> to vector<16x8x128xf32>
    %40 = arith.mulf %27, %39 : vector<16x8x128xf32>
    %41 = vector.shape_cast %20 : vector<1x128xf32> to vector<1x1x128xf32>
    %42 = vector.broadcast %41 : vector<1x1x128xf32> to vector<16x8x128xf32>
    %43 = arith.addf %40, %42 : vector<16x8x128xf32>
    %cst_29 = arith.constant 0.000000e+00 : f32
    %44 = vector.broadcast %cst_29 : f32 to vector<16x8x128xf32>
    %45 = arith.maximumf %43, %44 : vector<16x8x128xf32>
    %46 = vector.shape_cast %45 : vector<16x8x128xf32> to vector<128x128xf32>
    %c128 = arith.constant 128 : index
    %c0_30 = arith.constant 0 : index
    %47 = vector.load %arg2[%c128, %c0_30] : memref<512x128xf32, #tpu.memory_space<vmem>>, vector<128x128xf32>
    %cst_31 = arith.constant dense<0.000000e+00> : vector<128x128xf32>
    %48 = tpu.matmul %46, %47, %cst_31 {dimension_numbers = #tpu.dot_dimension_numbers<[1], [0], [0], [1], [0, 0, 1, 1], [], []>} : vector<128x128xf32>, vector<128x128xf32>, vector<128x128xf32> -> vector<128x128xf32>
    %c2_32 = arith.constant 2 : index
    %c0_33 = arith.constant 0 : index
    %49 = vector.load %arg3[%c2_32, %c0_33] : memref<8x128xf32, #tpu.memory_space<vmem>>, vector<1x128xf32>
    %c3_34 = arith.constant 3 : index
    %c0_35 = arith.constant 0 : index
    %50 = vector.load %arg3[%c3_34, %c0_35] : memref<8x128xf32, #tpu.memory_space<vmem>>, vector<1x128xf32>
    %51 = vector.shape_cast %48 : vector<128x128xf32> to vector<16x8x128xf32>
    %cst_36 = arith.constant dense<0.000000e+00> : vector<16x128xf32>
    %52 = vector.multi_reduction <add>, %51, %cst_36 [1] : vector<16x8x128xf32> to vector<16x128xf32>
    %53 = vector.shape_cast %52 : vector<16x128xf32> to vector<16x1x128xf32>
    %cst_37 = arith.constant 8.000000e+00 : f32
    %54 = vector.broadcast %cst_37 : f32 to vector<16x1x128xf32>
    %55 = arith.divf %53, %54 : vector<16x1x128xf32>
    %56 = vector.broadcast %55 : vector<16x1x128xf32> to vector<16x8x128xf32>
    %57 = arith.subf %51, %56 : vector<16x8x128xf32>
    %58 = arith.mulf %57, %57 : vector<16x8x128xf32>
    %cst_38 = arith.constant dense<0.000000e+00> : vector<16x128xf32>
    %59 = vector.multi_reduction <add>, %58, %cst_38 [1] : vector<16x8x128xf32> to vector<16x128xf32>
    %60 = vector.shape_cast %59 : vector<16x128xf32> to vector<16x1x128xf32>
    %cst_39 = arith.constant 8.000000e+00 : f32
    %61 = vector.broadcast %cst_39 : f32 to vector<16x1x128xf32>
    %62 = arith.divf %60, %61 : vector<16x1x128xf32>
    %cst_40 = arith.constant 9.99999974E-6 : f32
    %63 = vector.broadcast %cst_40 : f32 to vector<16x1x128xf32>
    %64 = arith.addf %62, %63 : vector<16x1x128xf32>
    %65 = math.rsqrt %64 : vector<16x1x128xf32>
    %66 = vector.shape_cast %49 : vector<1x128xf32> to vector<1x1x128xf32>
    %67 = vector.broadcast %66 : vector<1x1x128xf32> to vector<16x1x128xf32>
    %68 = arith.mulf %67, %65 : vector<16x1x128xf32>
    %69 = vector.broadcast %68 : vector<16x1x128xf32> to vector<16x8x128xf32>
    %70 = arith.mulf %57, %69 : vector<16x8x128xf32>
    %71 = vector.shape_cast %50 : vector<1x128xf32> to vector<1x1x128xf32>
    %72 = vector.broadcast %71 : vector<1x1x128xf32> to vector<16x8x128xf32>
    %73 = arith.addf %70, %72 : vector<16x8x128xf32>
    %cst_41 = arith.constant 0.000000e+00 : f32
    %74 = vector.broadcast %cst_41 : f32 to vector<16x8x128xf32>
    %75 = arith.maximumf %73, %74 : vector<16x8x128xf32>
    %76 = vector.shape_cast %75 : vector<16x8x128xf32> to vector<128x128xf32>
    %c256 = arith.constant 256 : index
    %c0_42 = arith.constant 0 : index
    %77 = vector.load %arg2[%c256, %c0_42] : memref<512x128xf32, #tpu.memory_space<vmem>>, vector<128x128xf32>
    %cst_43 = arith.constant dense<0.000000e+00> : vector<128x128xf32>
    %78 = tpu.matmul %76, %77, %cst_43 {dimension_numbers = #tpu.dot_dimension_numbers<[1], [0], [0], [1], [0, 0, 1, 1], [], []>} : vector<128x128xf32>, vector<128x128xf32>, vector<128x128xf32> -> vector<128x128xf32>
    %c4 = arith.constant 4 : index
    %c0_44 = arith.constant 0 : index
    %79 = vector.load %arg3[%c4, %c0_44] : memref<8x128xf32, #tpu.memory_space<vmem>>, vector<1x128xf32>
    %c5 = arith.constant 5 : index
    %c0_45 = arith.constant 0 : index
    %80 = vector.load %arg3[%c5, %c0_45] : memref<8x128xf32, #tpu.memory_space<vmem>>, vector<1x128xf32>
    %81 = vector.shape_cast %78 : vector<128x128xf32> to vector<16x8x128xf32>
    %cst_46 = arith.constant dense<0.000000e+00> : vector<16x128xf32>
    %82 = vector.multi_reduction <add>, %81, %cst_46 [1] : vector<16x8x128xf32> to vector<16x128xf32>
    %83 = vector.shape_cast %82 : vector<16x128xf32> to vector<16x1x128xf32>
    %cst_47 = arith.constant 8.000000e+00 : f32
    %84 = vector.broadcast %cst_47 : f32 to vector<16x1x128xf32>
    %85 = arith.divf %83, %84 : vector<16x1x128xf32>
    %86 = vector.broadcast %85 : vector<16x1x128xf32> to vector<16x8x128xf32>
    %87 = arith.subf %81, %86 : vector<16x8x128xf32>
    %88 = arith.mulf %87, %87 : vector<16x8x128xf32>
    %cst_48 = arith.constant dense<0.000000e+00> : vector<16x128xf32>
    %89 = vector.multi_reduction <add>, %88, %cst_48 [1] : vector<16x8x128xf32> to vector<16x128xf32>
    %90 = vector.shape_cast %89 : vector<16x128xf32> to vector<16x1x128xf32>
    %cst_49 = arith.constant 8.000000e+00 : f32
    %91 = vector.broadcast %cst_49 : f32 to vector<16x1x128xf32>
    %92 = arith.divf %90, %91 : vector<16x1x128xf32>
    %cst_50 = arith.constant 9.99999974E-6 : f32
    %93 = vector.broadcast %cst_50 : f32 to vector<16x1x128xf32>
    %94 = arith.addf %92, %93 : vector<16x1x128xf32>
    %95 = math.rsqrt %94 : vector<16x1x128xf32>
    %96 = vector.shape_cast %79 : vector<1x128xf32> to vector<1x1x128xf32>
    %97 = vector.broadcast %96 : vector<1x1x128xf32> to vector<16x1x128xf32>
    %98 = arith.mulf %97, %95 : vector<16x1x128xf32>
    %99 = vector.broadcast %98 : vector<16x1x128xf32> to vector<16x8x128xf32>
    %100 = arith.mulf %87, %99 : vector<16x8x128xf32>
    %101 = vector.shape_cast %80 : vector<1x128xf32> to vector<1x1x128xf32>
    %102 = vector.broadcast %101 : vector<1x1x128xf32> to vector<16x8x128xf32>
    %103 = arith.addf %100, %102 : vector<16x8x128xf32>
    %cst_51 = arith.constant 0.000000e+00 : f32
    %104 = vector.broadcast %cst_51 : f32 to vector<16x8x128xf32>
    %105 = arith.maximumf %103, %104 : vector<16x8x128xf32>
    %106 = vector.shape_cast %105 : vector<16x8x128xf32> to vector<128x128xf32>
    %c384 = arith.constant 384 : index
    %c0_52 = arith.constant 0 : index
    %107 = vector.load %arg2[%c384, %c0_52] : memref<512x128xf32, #tpu.memory_space<vmem>>, vector<128x128xf32>
    %cst_53 = arith.constant dense<0.000000e+00> : vector<128x128xf32>
    %108 = tpu.matmul %106, %107, %cst_53 {dimension_numbers = #tpu.dot_dimension_numbers<[1], [0], [0], [1], [0, 0, 1, 1], [], []>} : vector<128x128xf32>, vector<128x128xf32>, vector<128x128xf32> -> vector<128x128xf32>
    %c6 = arith.constant 6 : index
    %c0_54 = arith.constant 0 : index
    %109 = vector.load %arg3[%c6, %c0_54] : memref<8x128xf32, #tpu.memory_space<vmem>>, vector<1x128xf32>
    %110 = vector.broadcast %109 : vector<1x128xf32> to vector<128x128xf32>
    %111 = arith.addf %108, %110 : vector<128x128xf32>
    %112 = vector.shape_cast %111 : vector<128x128xf32> to vector<16x8x128xf32>
    %c0_55 = arith.constant 0 : index
    %c0_56 = arith.constant 0 : index
    %c0_57 = arith.constant 0 : index
    %113 = vector.load %arg4[%c0_55, %c0_56, %c0_57] : memref<16x8x128xf32, #tpu.memory_space<vmem>>, vector<16x8x128xf32>
    tpu.vector_store %arg4[%c0_55, %c0_56, %c0_57], %112 {strides = array<i32>} : memref<16x8x128xf32, #tpu.memory_space<vmem>>, vector<16x8x128xf32>,
    return
  }
  func.func @transform_0(%arg0: i32) -> (i32, i32, i32, i32) {
    %c0_i32 = arith.constant 0 : i32
    %c0_i32_0 = arith.constant 0 : i32
    %c0_i32_1 = arith.constant 0 : i32
    %c0_i32_2 = arith.constant 0 : i32
    return %arg0, %c0_i32, %c0_i32_0, %c0_i32_1 : i32, i32, i32, i32
  }
  func.func @transform_1(%arg0: i32) -> (i32, i32) {
    %c0_i32 = arith.constant 0 : i32
    %c0_i32_0 = arith.constant 0 : i32
    %c0_i32_1 = arith.constant 0 : i32
    return %c0_i32, %c0_i32_0 : i32, i32
  }
  func.func @transform_2(%arg0: i32) -> (i32, i32) {
    %c0_i32 = arith.constant 0 : i32
    %c0_i32_0 = arith.constant 0 : i32
    %c0_i32_1 = arith.constant 0 : i32
    return %c0_i32, %c0_i32_0 : i32, i32
  }
  func.func @transform_3(%arg0: i32) -> (i32, i32, i32) {
    %c0_i32 = arith.constant 0 : i32
    %c0_i32_0 = arith.constant 0 : i32
    %c0_i32_1 = arith.constant 0 : i32
    return %arg0, %c0_i32, %c0_i32_0 : i32, i32, i32
  }
}

</mosaic_0001>

<llo_original>
// kernel: tpu_custom_call.1
$region0: #{tpu_custom_call.1}
  #allocation0 [shape = 'u32[]', space=smem, size = 0x4, offset = 0x4, fixed_abs, tag = 'smem constant byte address 0x4 - core index']
  #allocation1 [shape = 'u32[144,128]{1,0:T(1,128)}', space=vmem, size = 0x12000, scoped, tag = 'internal scratch']
  %s0 = inlined_call_operand.vmem [shape: f32[32,4,8,15], index: 0, kind: input, shape index: {}]
  %s1 = inlined_call_operand.vmem [shape: f32[512,128], index: 1, kind: input, shape index: {}]
  %s2 = inlined_call_operand.vmem [shape: f32[8,128], index: 2, kind: input, shape index: {}]
  %s3 = inlined_call_operand.hbm [shape: f32[32,8,128], index: 3, kind: output, shape index: {}]
  %s4 = sld [smem:[#allocation0]]
  $region45: #{tpu_custom_call.1} parent=0
    _
  %s6 = ssub.s32 1, %s4
  %s7 = scalar_select 0, %s6, %s4
  $region1: #{tpu_custom_call.1} parent=0
    #allocation2 [shape = 'u8[131072]{0}', space=vmem, size = 0x20000, scoped, tag = 'output window, operand 0']
    #allocation3 [shape = 's32[2]{0}', space=sflag, size = 0x8, scoped, tag = 'scoped memory for tpu_custom_call.1']
    %8 = vsyncpa [#allocation3], 0
    %s9 = scalar_lea.sflag [#allocation3], 1
    %10 = vsyncpa %s9, 0
    loop: start=0, step=1, limit=4
    $region2: #{tpu_custom_call.1} parent=1 // loop_pre_header
      _
    $region3: #{tpu_custom_call.1} parent=1 // loop_header
      %s12 = sphi 0, %s16
      %p13 = scmp.ge.s32.totalorder %s12, 4
      %s22 = sphi 0, %s24
      %s25 = sphi 0, %s22
      %s26 = sphi 0, %s25
      %s42 = sphi 0, %s26
      %s46 = sphi 0, %s46
      %s48 = sphi 0, %s46
      %s49 = sphi 0, %s48
      %s63 = sphi 0, %s49
      %s67 = sphi 0, %s67
      %s69 = sphi 0, %s67
      %s70 = sphi 0, %s69
      %s84 = sphi 0, %s70
      %s90 = sphi 0, %s92
      %s93 = sphi 0, %s90
      %s94 = sphi 0, %s93
      %s110 = sphi 0, %s94
    $region4: #{tpu_custom_call.1} parent=1 // loop_header_branch
      %15 = sbr.rel (%p13) target = $region8
    $region5: #{tpu_custom_call.1} parent=1 // loop_body
      %s17 = ssub.s32 %s12, 1
      %s18 = ssub.s32 %s12, 2
      %s19 = sadd.s32 %s12, 1
      %s20 = ssub.s32 %s12, %s19
      %p21 = scmp.eq.s32.totalorder %s20, 0
      %s23 = sadd.s32 %s22, 1
      %s24 = scalar_select %p21, %s22, %s23
      %p27 = pneg %p21
      %p28 = scmp.eq.s32.totalorder %s12, 1
      %p29 = por %p27, %p28
      %p30 = scmp.ne.s32.totalorder %s22, %s25
      %p31 = scmp.eq.s32.totalorder %s12, 0
      %p32 = por %p30, %p31
      %p33 = scmp.ne.s32.totalorder %s22, %s25
      %p34 = scmp.eq.s32.totalorder %s17, 1
      %p35 = por %p33, %p34
      %p36 = scmp.ne.s32.totalorder %s25, %s26
      %p37 = scmp.eq.s32.totalorder %s17, 0
      %p38 = por %p36, %p37
      %p39 = scmp.ne.s32.totalorder %s25, %s26
      %p40 = scmp.eq.s32.totalorder %s18, 1
      %p41 = por %p39, %p40
      %p43 = scmp.ne.s32.totalorder %s26, %s42
      %p44 = scmp.eq.s32.totalorder %s18, 0
      %p45 = por %p43, %p44
      %s47 = sadd.s32 %s46, 1
      %p50 = scmp.eq.s32.totalorder %s12, 1
      %p51 = scmp.ne.s32.totalorder %s46, %s48
      %p52 = scmp.eq.s32.totalorder %s12, 0
      %p53 = por %p51, %p52
      %p54 = scmp.ne.s32.totalorder %s46, %s48
      %p55 = scmp.eq.s32.totalorder %s17, 1
      %p56 = por %p54, %p55
      %p57 = scmp.ne.s32.totalorder %s48, %s49
      %p58 = scmp.eq.s32.totalorder %s17, 0
      %p59 = por %p57, %p58
      %p60 = scmp.ne.s32.totalorder %s48, %s49
      %p61 = scmp.eq.s32.totalorder %s18, 1
      %p62 = por %p60, %p61
      %p64 = scmp.ne.s32.totalorder %s49, %s63
      %p65 = scmp.eq.s32.totalorder %s18, 0
      %p66 = por %p64, %p65
      %s68 = sadd.s32 %s67, 1
      %p71 = scmp.eq.s32.totalorder %s12, 1
      %p72 = scmp.ne.s32.totalorder %s67, %s69
      %p73 = scmp.eq.s32.totalorder %s12, 0
      %p74 = por %p72, %p73
      %p75 = scmp.ne.s32.totalorder %s67, %s69
      %p76 = scmp.eq.s32.totalorder %s17, 1
      %p77 = por %p75, %p76
      %p78 = scmp.ne.s32.totalorder %s69, %s70
      %p79 = scmp.eq.s32.totalorder %s17, 0
      %p80 = por %p78, %p79
      %p81 = scmp.ne.s32.totalorder %s69, %s70
      %p82 = scmp.eq.s32.totalorder %s18, 1
      %p83 = por %p81, %p82
      %p85 = scmp.ne.s32.totalorder %s70, %s84
      %p86 = scmp.eq.s32.totalorder %s18, 0
      %p87 = por %p85, %p86
      %s88 = ssub.s32 %s12, %s19
      %p89 = scmp.eq.s32.totalorder %s88, 0
      %s91 = sadd.s32 %s90, 1
      %s92 = scalar_select %p89, %s90, %s91
      %p95 = pneg %p89
      %p96 = scmp.eq.s32.totalorder %s12, 1
      %p97 = por %p95, %p96
      %p98 = scmp.ne.s32.totalorder %s90, %s93
      %p99 = scmp.eq.s32.totalorder %s12, 0
      %p100 = por %p98, %p99
      %p101 = scmp.ne.s32.totalorder %s90, %s93
      %p102 = scmp.eq.s32.totalorder %s17, 1
      %p103 = por %p101, %p102
      %p104 = scmp.ne.s32.totalorder %s93, %s94
      %p105 = scmp.eq.s32.totalorder %s17, 0
      %p106 = por %p104, %p105
      %p107 = scmp.ne.s32.totalorder %s93, %s94
      %p108 = scmp.eq.s32.totalorder %s18, 1
      %p109 = por %p107, %p108
      %p111 = scmp.ne.s32.totalorder %s94, %s110
      %p112 = scmp.eq.s32.totalorder %s18, 0
      %p113 = por %p111, %p112
      %p114 = scmp.le.s32.totalorder 1, %s12
      %p115 = scmp.lt.s32.totalorder %s12, 3
      %p116 = pnand %p114, %p115
      %p117 = pneg %p116
      // Predicated region
      $region9: #{tpu_custom_call.1} parent=5 // pred_check
        _
      $region10: #{tpu_custom_call.1} parent=5 // pred_check_branch
        %119 = sbr.rel (%p116) target = $region12
      $region11: #{tpu_custom_call.1} parent=5 // pred_region
        %s120 = ssub.s32 %s12, 1
        // Predicated region
        $region13: #{tpu_custom_call.1} parent=11 // pred_check
          %p121 = pneg %p59
        $region14: #{tpu_custom_call.1} parent=11 // pred_check_branch
          %123 = sbr.rel (%p121) target = $region16
        $region15: #{tpu_custom_call.1} parent=11 // pred_region
          _
        $region16: #{tpu_custom_call.1} parent=11 // pred_fallthru
          _
        // Predicated region
        $region17: #{tpu_custom_call.1} parent=11 // pred_check
          %p124 = pneg %p80
        $region18: #{tpu_custom_call.1} parent=11 // pred_check_branch
          %126 = sbr.rel (%p124) target = $region20
        $region19: #{tpu_custom_call.1} parent=11 // pred_region
          _
        $region20: #{tpu_custom_call.1} parent=11 // pred_fallthru
          _
      $region12: #{tpu_custom_call.1} parent=5 // pred_fallthru
        _
      %p127 = scmp.lt.s32.totalorder %s12, 2
      // Predicated region
      $region21: #{tpu_custom_call.1} parent=5 // pred_check
        %p128 = pneg %p127
      $region22: #{tpu_custom_call.1} parent=5 // pred_check_branch
        %130 = sbr.rel (%p128) target = $region24
      $region23: #{tpu_custom_call.1} parent=5 // pred_region
        // Predicated region
        $region25: #{tpu_custom_call.1} parent=23 // pred_check
          %p131 = pneg %p32
        $region26: #{tpu_custom_call.1} parent=23 // pred_check_branch
          %133 = sbr.rel (%p131) target = $region28
        $region27: #{tpu_custom_call.1} parent=23 // pred_region
          %s134 = smul.u32 16, %s12
          %p135 = scmp.lt.s32.totalorder %s134, 31
          %s136 = scalar_select %p135, %s134, 31
          %s137 = smul.addr %s136, 4
          %s138 = smul.addr %s137, 8
          %s139 = scalar_lea.vmem %s0, %s138
          %s140 = smul.u32 16, %s12
        $region28: #{tpu_custom_call.1} parent=23 // pred_fallthru
          _
      $region24: #{tpu_custom_call.1} parent=5 // pred_fallthru
        _
      %p141 = scmp.le.s32.totalorder 1, %s12
      %p142 = scmp.lt.s32.totalorder %s12, 3
      %p143 = pnand %p141, %p142
      %p144 = pneg %p143
      // Predicated region
      $region29: #{tpu_custom_call.1} parent=5 // pred_check
        _
      $region30: #{tpu_custom_call.1} parent=5 // pred_check_branch
        %146 = sbr.rel (%p143) target = $region32
      $region31: #{tpu_custom_call.1} parent=5 // pred_region
        %s147 = ssub.s32 %s12, 1
        %s148 = smul.u32 16, %s17
        %p149 = scmp.lt.s32.totalorder %s148, 31
        %s150 = scalar_select %p149, %s148, 31
        %s151 = smul.addr %s150, 4
        %s152 = smul.addr %s151, 8
        %s153 = scalar_lea.vmem %s0, %s152
        %p154 = pneg %p38
        %p155 = pneg %p35
        %p156 = pneg %p59
        %p157 = pneg %p56
        %p158 = pneg %p80
        %p159 = pneg %p77
        %p160 = pneg %p106
        %p161 = pneg %p103
        %s162 = sand.u32 %s93, 1
        %s163 = scalar_lea.sflag [#allocation3], %s162
        %s164 = sand.u32 %s93, 1
        %s165 = smul.addr %s164, 128
        %s166 = scalar_lea.vmem [#allocation2], %s165
        %s167 = smul.u32 16, %s17
        %p168 = scmp.lt.s32.totalorder %s167, 31
        %s169 = scalar_select %p168, %s167, 31
        %s170 = smul.addr %s169, 4
        %s171 = smul.addr %s170, 8
        %s172 = scalar_lea.vmem %s0, %s171
        %s173 = smul.u32 16, %s17
        %s174 = smul.u32 16, %s17
        %v175 = vld [vmem:[%s172] sm:$0xff]
        %v176 = vld [vmem:[%s172 + $0x20] sm:$0xff]
        %v177 = vld [vmem:[%s172 + $0x40] sm:$0xff]
        %v178 = vld [vmem:[%s172 + $0x60] sm:$0xff]
        %v179 = vld [vmem:[%s172 + $0x80] sm:$0xff]
        %v180 = vld [vmem:[%s172 + $0xa0] sm:$0xff]
        %v181 = vld [vmem:[%s172 + $0xc0] sm:$0xff]
        %v182 = vld [vmem:[%s172 + $0xe0] sm:$0xff]
        %v183 = vld [vmem:[%s172 + $0x100] sm:$0xff]
        %v184 = vld [vmem:[%s172 + $0x120] sm:$0xff]
        %v185 = vld [vmem:[%s172 + $0x140] sm:$0xff]
        %v186 = vld [vmem:[%s172 + $0x160] sm:$0xff]
        %v187 = vld [vmem:[%s172 + $0x180] sm:$0xff]
        %v188 = vld [vmem:[%s172 + $0x1a0] sm:$0xff]
        %v189 = vld [vmem:[%s172 + $0x1c0] sm:$0xff]
        %v190 = vld [vmem:[%s172 + $0x1e0] sm:$0xff]
        %v191 = vld [vmem:[%s1] sm:$0xff]
        %v192 = vld [vmem:[%s1 + $0x8] sm:$0x7f]
        %s193 = scalar_lea.vmem %s172, 8
        %v194 = vld [vmem:[%s193] sm:$0xff]
        %v195 = vld [vmem:[%s193 + $0x20] sm:$0xff]
        %v196 = vld [vmem:[%s193 + $0x40] sm:$0xff]
        %v197 = vld [vmem:[%s193 + $0x60] sm:$0xff]
        %v198 = vld [vmem:[%s193 + $0x80] sm:$0xff]
        %v199 = vld [vmem:[%s193 + $0xa0] sm:$0xff]
        %v200 = vld [vmem:[%s193 + $0xc0] sm:$0xff]
        %v201 = vld [vmem:[%s193 + $0xe0] sm:$0xff]
        %v202 = vld [vmem:[%s193 + $0x100] sm:$0xff]
        %v203 = vld [vmem:[%s193 + $0x120] sm:$0xff]
        %v204 = vld [vmem:[%s193 + $0x140] sm:$0xff]
        %v205 = vld [vmem:[%s193 + $0x160] sm:$0xff]
        %v206 = vld [vmem:[%s193 + $0x180] sm:$0xff]
        %v207 = vld [vmem:[%s193 + $0x1a0] sm:$0xff]
        %v208 = vld [vmem:[%s193 + $0x1c0] sm:$0xff]
        %v209 = vld [vmem:[%s193 + $0x1e0] sm:$0xff]
        %v210 = vld [vmem:[%s1 + $0x20] sm:$0xff]
        %v211 = vld [vmem:[%s1 + $0x28] sm:$0x7f]
        %vm212 = vcmask 121856
        %v214 = vsel %vm212, %v194, 0
        %v217 = vsel %vm212, %v195, 0
        %v220 = vsel %vm212, %v196, 0
        %v223 = vsel %vm212, %v197, 0
        %v226 = vsel %vm212, %v198, 0
        %v229 = vsel %vm212, %v199, 0
        %v232 = vsel %vm212, %v200, 0
        %v235 = vsel %vm212, %v201, 0
        %v238 = vsel %vm212, %v202, 0
        %v241 = vsel %vm212, %v203, 0
        %v244 = vsel %vm212, %v204, 0
        %v247 = vsel %vm212, %v205, 0
        %v250 = vsel %vm212, %v206, 0
        %v253 = vsel %vm212, %v207, 0
        %v256 = vsel %vm212, %v208, 0
        %v259 = vsel %vm212, %v209, 0
        %vm261 = vcmask 1046528
        %v263 = vsel %vm261, %v211, 0
        %265 = vmatprep.subr.mxu0 0.0
        %266 = vmatpush1.msra.mxu0 %v210
        %267 = vmatprep.subr.mxu0 0.0
        %268 = vmatpush1.msra.mxu0 %v263
        %269 = vmatprep.subr.mxu0 0.0
        %270 = vmatpush1.msra.mxu0 0.0
        %271 = vmatprep.subr.mxu0 0.0
        %272 = vmatpush1.msra.mxu0 0.0
        %273 = vmatprep.subr.mxu0 0.0
        %274 = vmatpush1.msra.mxu0 0.0
        %275 = vmatprep.subr.mxu0 0.0
        %276 = vmatpush1.msra.mxu0 0.0
        %277 = vmatprep.subr.mxu0 0.0
        %278 = vmatpush1.msra.mxu0 0.0
        %279 = vmatprep.subr.mxu0 0.0
        %280 = vmatpush1.msra.mxu0 0.0
        %281 = vmatprep.subr.mxu0 0.0
        %282 = vmatpush1.msra.mxu0 0.0
        %283 = vmatprep.subr.mxu0 0.0
        %284 = vmatpush1.msra.mxu0 0.0
        %285 = vmatprep.subr.mxu0 0.0
        %286 = vmatpush1.msra.mxu0 0.0
        %287 = vmatprep.subr.mxu0 0.0
        %288 = vmatpush1.msra.mxu0 0.0
        %289 = vmatprep.subr.mxu0 0.0
        %290 = vmatpush1.msra.mxu0 0.0
        %291 = vmatprep.subr.mxu0 0.0
        %292 = vmatpush1.msra.mxu0 0.0
        %293 = vmatprep.subr.mxu0 0.0
        %294 = vmatpush1.msra.mxu0 0.0
        %295 = vmatprep.subr.mxu0 0.0
        %296 = vmatpush1.msra.mxu0 0.0
        %297 = vmatprep.subr.mxu0 0.0
        %298 = vmatpush1.msra.mxu0 0.0
        %299 = vmatprep.subr.mxu0 0.0
        %300 = vmatpush1.msra.mxu0 0.0
        %301 = vmatprep.subr.mxu0 0.0
        %302 = vmatpush1.msra.mxu0 0.0
        %303 = vmatprep.subr.mxu0 0.0
        %304 = vmatpush1.msra.mxu0 0.0
        %305 = vmatprep.subr.mxu0 0.0
        %306 = vmatpush1.msra.mxu0 0.0
        %307 = vmatprep.subr.mxu0 0.0
        %308 = vmatpush1.msra.mxu0 0.0
        %309 = vmatprep.subr.mxu0 0.0
        %310 = vmatpush1.msra.mxu0 0.0
        %311 = vmatprep.subr.mxu0 0.0
        %312 = vmatpush1.msra.mxu0 0.0
        %313 = vmatprep.subr.mxu0 0.0
        %314 = vmatpush1.msra.mxu0 0.0
        %315 = vmatprep.subr.mxu0 0.0
        %316 = vmatpush1.msra.mxu0 0.0
        %317 = vmatprep.subr.mxu0 0.0
        %318 = vmatpush1.msra.mxu0 0.0
        %319 = vmatprep.subr.mxu0 0.0
        %320 = vmatpush1.msra.mxu0 0.0
        %321 = vmatprep.subr.mxu0 0.0
        %322 = vmatpush1.msra.mxu0 0.0
        %323 = vmatprep.subr.mxu0 0.0
        %324 = vmatpush1.msra.mxu0 0.0
        %325 = vmatprep.subr.mxu0 0.0
        %326 = vmatpush1.msra.mxu0 0.0
        %327 = vmatprep.subr.mxu0 0.0
        %328 = vmatpush1.msra.mxu0 0.0
        %329 = vmatprep.mubr.f32.mxu0 0.0
        %330 = vmatmul.mubr.f32.gmra.mrb[0].mxu0 %v214
        %v331 = vpop.f32.mrb[0].mxu0
        %v332 = vadd.f32 0.0, %v331
        %v333 = vpop.f32.mrb[0].mxu0
        %334 = vmatprep.mubr.f32.mxu0 0.0
        %335 = vmatmul.mubr.f32.gmra.mrb[0].mxu0 %v217
        %v336 = vpop.f32.mrb[0].mxu0
        %v337 = vadd.f32 0.0, %v336
        %v338 = vpop.f32.mrb[0].mxu0
        %339 = vmatprep.mubr.f32.mxu0 0.0
        %340 = vmatmul.mubr.f32.gmra.mrb[0].mxu0 %v220
        %v341 = vpop.f32.mrb[0].mxu0
        %v342 = vadd.f32 0.0, %v341
        %v343 = vpop.f32.mrb[0].mxu0
        %344 = vmatprep.mubr.f32.mxu0 0.0
        %345 = vmatmul.mubr.f32.gmra.mrb[0].mxu0 %v223
        %v346 = vpop.f32.mrb[0].mxu0
        %v347 = vadd.f32 0.0, %v346
        %v348 = vpop.f32.mrb[0].mxu0
        %349 = vmatprep.mubr.f32.mxu0 0.0
        %350 = vmatmul.mubr.f32.gmra.mrb[0].mxu0 %v226
        %v351 = vpop.f32.mrb[0].mxu0
        %v352 = vadd.f32 0.0, %v351
        %v353 = vpop.f32.mrb[0].mxu0
        %354 = vmatprep.mubr.f32.mxu0 0.0
        %355 = vmatmul.mubr.f32.gmra.mrb[0].mxu0 %v229
        %v356 = vpop.f32.mrb[0].mxu0
        %v357 = vadd.f32 0.0, %v356
        %v358 = vpop.f32.mrb[0].mxu0
        %359 = vmatprep.mubr.f32.mxu0 0.0
        %360 = vmatmul.mubr.f32.gmra.mrb[0].mxu0 %v232
        %v361 = vpop.f32.mrb[0].mxu0
        %v362 = vadd.f32 0.0, %v361
        %v363 = vpop.f32.mrb[0].mxu0
        %364 = vmatprep.mubr.f32.mxu0 0.0
        %365 = vmatmul.mubr.f32.gmra.mrb[0].mxu0 %v235
        %v366 = vpop.f32.mrb[0].mxu0
        %v367 = vadd.f32 0.0, %v366
        %v368 = vpop.f32.mrb[0].mxu0
        %369 = vmatprep.mubr.f32.mxu0 0.0
        %370 = vmatmul.mubr.f32.gmra.mrb[0].mxu0 %v238
        %v371 = vpop.f32.mrb[0].mxu0
        %v372 = vadd.f32 0.0, %v371
        %v373 = vpop.f32.mrb[0].mxu0
        %374 = vmatprep.mubr.f32.mxu0 0.0
        %375 = vmatmul.mubr.f32.gmra.mrb[0].mxu0 %v241
        %v376 = vpop.f32.mrb[0].mxu0
        %v377 = vadd.f32 0.0, %v376
        %v378 = vpop.f32.mrb[0].mxu0
        %379 = vmatprep.mubr.f32.mxu0 0.0
        %380 = vmatmul.mubr.f32.gmra.mrb[0].mxu0 %v244
        %v381 = vpop.f32.mrb[0].mxu0
        %v382 = vadd.f32 0.0, %v381
        %v383 = vpop.f32.mrb[0].mxu0
        %384 = vmatprep.mubr.f32.mxu0 0.0
        %385 = vmatmul.mubr.f32.gmra.mrb[0].mxu0 %v247
        %v386 = vpop.f32.mrb[0].mxu0
        %v387 = vadd.f32 0.0, %v386
        %v388 = vpop.f32.mrb[0].mxu0
        %389 = vmatprep.mubr.f32.mxu0 0.0
        %390 = vmatmul.mubr.f32.gmra.mrb[0].mxu0 %v250
        %v391 = vpop.f32.mrb[0].mxu0
        %v392 = vadd.f32 0.0, %v391
        %v393 = vpop.f32.mrb[0].mxu0
        %394 = vmatprep.mubr.f32.mxu0 0.0
        %395 = vmatmul.mubr.f32.gmra.mrb[0].mxu0 %v253
        %v396 = vpop.f32.mrb[0].mxu0
        %v397 = vadd.f32 0.0, %v396
        %v398 = vpop.f32.mrb[0].mxu0
        %399 = vmatprep.mubr.f32.mxu0 0.0
        %400 = vmatmul.mubr.f32.gmra.mrb[0].mxu0 %v256
        %v401 = vpop.f32.mrb[0].mxu0
        %v402 = vadd.f32 0.0, %v401
        %v403 = vpop.f32.mrb[0].mxu0
        %404 = vmatprep.mubr.f32.mxu0 0.0
        %405 = vmatmul.mubr.f32.gmra.mrb[0].mxu0 %v259
        %v406 = vpop.f32.mrb[0].mxu0
        %v407 = vadd.f32 0.0, %v406
        %v408 = vpop.f32.mrb[0].mxu0
        %409 = vdwg.mxu0
        %v411 = vsel %vm212, %v175, 0
        %v414 = vsel %vm212, %v176, 0
        %v417 = vsel %vm212, %v177, 0
        %v420 = vsel %vm212, %v178, 0
        %v423 = vsel %vm212, %v179, 0
        %v426 = vsel %vm212, %v180, 0
        %v429 = vsel %vm212, %v181, 0
        %v432 = vsel %vm212, %v182, 0
        %v435 = vsel %vm212, %v183, 0
        %v438 = vsel %vm212, %v184, 0
        %v441 = vsel %vm212, %v185, 0
        %v444 = vsel %vm212, %v186, 0
        %v447 = vsel %vm212, %v187, 0
        %v450 = vsel %vm212, %v188, 0
        %v453 = vsel %vm212, %v189, 0
        %v456 = vsel %vm212, %v190, 0
        %v459 = vsel %vm261, %v192, 0
        %461 = vmatprep.subr.mxu0 0.0
        %462 = vmatpush1.msra.mxu0 %v191
        %463 = vmatprep.subr.mxu0 0.0
        %464 = vmatpush1.msra.mxu0 %v459
        %465 = vmatprep.subr.mxu0 0.0
        %466 = vmatpush1.msra.mxu0 0.0
        %467 = vmatprep.subr.mxu0 0.0
        %468 = vmatpush1.msra.mxu0 0.0
        %469 = vmatprep.subr.mxu0 0.0
        %470 = vmatpush1.msra.mxu0 0.0
        %471 = vmatprep.subr.mxu0 0.0
        %472 = vmatpush1.msra.mxu0 0.0
        %473 = vmatprep.subr.mxu0 0.0
        %474 = vmatpush1.msra.mxu0 0.0
        %475 = vmatprep.subr.mxu0 0.0
        %476 = vmatpush1.msra.mxu0 0.0
        %477 = vmatprep.subr.mxu0 0.0
        %478 = vmatpush1.msra.mxu0 0.0
        %479 = vmatprep.subr.mxu0 0.0
        %480 = vmatpush1.msra.mxu0 0.0
        %481 = vmatprep.subr.mxu0 0.0
        %482 = vmatpush1.msra.mxu0 0.0
        %483 = vmatprep.subr.mxu0 0.0
        %484 = vmatpush1.msra.mxu0 0.0
        %485 = vmatprep.subr.mxu0 0.0
        %486 = vmatpush1.msra.mxu0 0.0
        %487 = vmatprep.subr.mxu0 0.0
        %488 = vmatpush1.msra.mxu0 0.0
        %489 = vmatprep.subr.mxu0 0.0
        %490 = vmatpush1.msra.mxu0 0.0
        %491 = vmatprep.subr.mxu0 0.0
        %492 = vmatpush1.msra.mxu0 0.0
        %493 = vmatprep.subr.mxu0 0.0
        %494 = vmatpush1.msra.mxu0 0.0
        %495 = vmatprep.subr.mxu0 0.0
        %496 = vmatpush1.msra.mxu0 0.0
        %497 = vmatprep.subr.mxu0 0.0
        %498 = vmatpush1.msra.mxu0 0.0
        %499 = vmatprep.subr.mxu0 0.0
        %500 = vmatpush1.msra.mxu0 0.0
        %501 = vmatprep.subr.mxu0 0.0
        %502 = vmatpush1.msra.mxu0 0.0
        %503 = vmatprep.subr.mxu0 0.0
        %504 = vmatpush1.msra.mxu0 0.0
        %505 = vmatprep.subr.mxu0 0.0
        %506 = vmatpush1.msra.mxu0 0.0
        %507 = vmatprep.subr.mxu0 0.0
        %508 = vmatpush1.msra.mxu0 0.0
        %509 = vmatprep.subr.mxu0 0.0
        %510 = vmatpush1.msra.mxu0 0.0
        %511 = vmatprep.subr.mxu0 0.0
        %512 = vmatpush1.msra.mxu0 0.0
        %513 = vmatprep.subr.mxu0 0.0
        %514 = vmatpush1.msra.mxu0 0.0
        %515 = vmatprep.subr.mxu0 0.0
        %516 = vmatpush1.msra.mxu0 0.0
        %517 = vmatprep.subr.mxu0 0.0
        %518 = vmatpush1.msra.mxu0 0.0
        %519 = vmatprep.subr.mxu0 0.0
        %520 = vmatpush1.msra.mxu0 0.0
        %521 = vmatprep.subr.mxu0 0.0
        %522 = vmatpush1.msra.mxu0 0.0
        %523 = vmatprep.subr.mxu0 0.0
        %524 = vmatpush1.msra.mxu0 0.0
        %525 = vmatprep.mubr.f32.mxu0 0.0
        %526 = vmatmul.mubr.f32.gmra.mrb[0].mxu0 %v411
        %v527 = vpop.f32.mrb[0].mxu0
        %v528 = vadd.f32 %v332, %v527
        %v529 = vpop.f32.mrb[0].mxu0
        %530 = vmatprep.mubr.f32.mxu0 0.0
        %531 = vmatmul.mubr.f32.gmra.mrb[0].mxu0 %v414
        %v532 = vpop.f32.mrb[0].mxu0
        %v533 = vadd.f32 %v337, %v532
        %v534 = vpop.f32.mrb[0].mxu0
        %535 = vmatprep.mubr.f32.mxu0 0.0
        %536 = vmatmul.mubr.f32.gmra.mrb[0].mxu0 %v417
        %v537 = vpop.f32.mrb[0].mxu0
        %v538 = vadd.f32 %v342, %v537
        %v539 = vpop.f32.mrb[0].mxu0
        %540 = vmatprep.mubr.f32.mxu0 0.0
        %541 = vmatmul.mubr.f32.gmra.mrb[0].mxu0 %v420
        %v542 = vpop.f32.mrb[0].mxu0
        %v543 = vadd.f32 %v347, %v542
        %v544 = vpop.f32.mrb[0].mxu0
        %545 = vmatprep.mubr.f32.mxu0 0.0
        %546 = vmatmul.mubr.f32.gmra.mrb[0].mxu0 %v423
        %v547 = vpop.f32.mrb[0].mxu0
        %v548 = vadd.f32 %v352, %v547
        %v549 = vpop.f32.mrb[0].mxu0
        %550 = vmatprep.mubr.f32.mxu0 0.0
        %551 = vmatmul.mubr.f32.gmra.mrb[0].mxu0 %v426
        %v552 = vpop.f32.mrb[0].mxu0
        %v553 = vadd.f32 %v357, %v552
        %v554 = vpop.f32.mrb[0].mxu0
        %555 = vmatprep.mubr.f32.mxu0 0.0
        %556 = vmatmul.mubr.f32.gmra.mrb[0].mxu0 %v429
        %v557 = vpop.f32.mrb[0].mxu0
        %v558 = vadd.f32 %v362, %v557
        %v559 = vpop.f32.mrb[0].mxu0
        %560 = vmatprep.mubr.f32.mxu0 0.0
        %561 = vmatmul.mubr.f32.gmra.mrb[0].mxu0 %v432
        %v562 = vpop.f32.mrb[0].mxu0
        %v563 = vadd.f32 %v367, %v562
        %v564 = vpop.f32.mrb[0].mxu0
        %565 = vmatprep.mubr.f32.mxu0 0.0
        %566 = vmatmul.mubr.f32.gmra.mrb[0].mxu0 %v435
        %v567 = vpop.f32.mrb[0].mxu0
        %v568 = vadd.f32 %v372, %v567
        %v569 = vpop.f32.mrb[0].mxu0
        %570 = vmatprep.mubr.f32.mxu0 0.0
        %571 = vmatmul.mubr.f32.gmra.mrb[0].mxu0 %v438
        %v572 = vpop.f32.mrb[0].mxu0
        %v573 = vadd.f32 %v377, %v572
        %v574 = vpop.f32.mrb[0].mxu0
        %575 = vmatprep.mubr.f32.mxu0 0.0
        %576 = vmatmul.mubr.f32.gmra.mrb[0].mxu0 %v441
        %v577 = vpop.f32.mrb[0].mxu0
        %v578 = vadd.f32 %v382, %v577
        %v579 = vpop.f32.mrb[0].mxu0
        %580 = vmatprep.mubr.f32.mxu0 0.0
        %581 = vmatmul.mubr.f32.gmra.mrb[0].mxu0 %v444
        %v582 = vpop.f32.mrb[0].mxu0
        %v583 = vadd.f32 %v387, %v582
        %v584 = vpop.f32.mrb[0].mxu0
        %585 = vmatprep.mubr.f32.mxu0 0.0
        %586 = vmatmul.mubr.f32.gmra.mrb[0].mxu0 %v447
        %v587 = vpop.f32.mrb[0].mxu0
        %v588 = vadd.f32 %v392, %v587
        %v589 = vpop.f32.mrb[0].mxu0
        %590 = vmatprep.mubr.f32.mxu0 0.0
        %591 = vmatmul.mubr.f32.gmra.mrb[0].mxu0 %v450
        %v592 = vpop.f32.mrb[0].mxu0
        %v593 = vadd.f32 %v397, %v592
        %v594 = vpop.f32.mrb[0].mxu0
        %595 = vmatprep.mubr.f32.mxu0 0.0
        %596 = vmatmul.mubr.f32.gmra.mrb[0].mxu0 %v453
        %v597 = vpop.f32.mrb[0].mxu0
        %v598 = vadd.f32 %v402, %v597
        %v599 = vpop.f32.mrb[0].mxu0
        %600 = vmatprep.mubr.f32.mxu0 0.0
        %601 = vmatmul.mubr.f32.gmra.mrb[0].mxu0 %v456
        %v602 = vpop.f32.mrb[0].mxu0
        %v603 = vadd.f32 %v407, %v602
        %v604 = vpop.f32.mrb[0].mxu0
        %605 = vdwg.mxu0
        %s606 = scalar_lea.vmem %s172, 16
        %v607 = vld [vmem:[%s606] sm:$0xff]
        %v608 = vld [vmem:[%s606 + $0x20] sm:$0xff]
        %v609 = vld [vmem:[%s606 + $0x40] sm:$0xff]
        %v610 = vld [vmem:[%s606 + $0x60] sm:$0xff]
        %v611 = vld [vmem:[%s606 + $0x80] sm:$0xff]
        %v612 = vld [vmem:[%s606 + $0xa0] sm:$0xff]
        %v613 = vld [vmem:[%s606 + $0xc0] sm:$0xff]
        %v614 = vld [vmem:[%s606 + $0xe0] sm:$0xff]
        %v615 = vld [vmem:[%s606 + $0x100] sm:$0xff]
        %v616 = vld [vmem:[%s606 + $0x120] sm:$0xff]
        %v617 = vld [vmem:[%s606 + $0x140] sm:$0xff]
        %v618 = vld [vmem:[%s606 + $0x160] sm:$0xff]
        %v619 = vld [vmem:[%s606 + $0x180] sm:$0xff]
        %v620 = vld [vmem:[%s606 + $0x1a0] sm:$0xff]
        %v621 = vld [vmem:[%s606 + $0x1c0] sm:$0xff]
        %v622 = vld [vmem:[%s606 + $0x1e0] sm:$0xff]
        %v623 = vld [vmem:[%s1 + $0x40] sm:$0xff]
        %v624 = vld [vmem:[%s1 + $0x48] sm:$0x7f]
        %v626 = vsel %vm212, %v607, 0
        %v629 = vsel %vm212, %v608, 0
        %v632 = vsel %vm212, %v609, 0
        %v635 = vsel %vm212, %v610, 0
        %v638 = vsel %vm212, %v611, 0
        %v641 = vsel %vm212, %v612, 0
        %v644 = vsel %vm212, %v613, 0
        %v647 = vsel %vm212, %v614, 0
        %v650 = vsel %vm212, %v615, 0
        %v653 = vsel %vm212, %v616, 0
        %v656 = vsel %vm212, %v617, 0
        %v659 = vsel %vm212, %v618, 0
        %v662 = vsel %vm212, %v619, 0
        %v665 = vsel %vm212, %v620, 0
        %v668 = vsel %vm212, %v621, 0
        %v671 = vsel %vm212, %v622, 0
        %v674 = vsel %vm261, %v624, 0
        %676 = vmatprep.subr.mxu0 0.0
        %677 = vmatpush1.msra.mxu0 %v623
        %678 = vmatprep.subr.mxu0 0.0
        %679 = vmatpush1.msra.mxu0 %v674
        %680 = vmatprep.subr.mxu0 0.0
        %681 = vmatpush1.msra.mxu0 0.0
        %682 = vmatprep.subr.mxu0 0.0
        %683 = vmatpush1.msra.mxu0 0.0
        %684 = vmatprep.subr.mxu0 0.0
        %685 = vmatpush1.msra.mxu0 0.0
        %686 = vmatprep.subr.mxu0 0.0
        %687 = vmatpush1.msra.mxu0 0.0
        %688 = vmatprep.subr.mxu0 0.0
        %689 = vmatpush1.msra.mxu0 0.0
        %690 = vmatprep.subr.mxu0 0.0
        %691 = vmatpush1.msra.mxu0 0.0
        %692 = vmatprep.subr.mxu0 0.0
        %693 = vmatpush1.msra.mxu0 0.0
        %694 = vmatprep.subr.mxu0 0.0
        %695 = vmatpush1.msra.mxu0 0.0
        %696 = vmatprep.subr.mxu0 0.0
        %697 = vmatpush1.msra.mxu0 0.0
        %698 = vmatprep.subr.mxu0 0.0
        %699 = vmatpush1.msra.mxu0 0.0
        %700 = vmatprep.subr.mxu0 0.0
        %701 = vmatpush1.msra.mxu0 0.0
        %702 = vmatprep.subr.mxu0 0.0
        %703 = vmatpush1.msra.mxu0 0.0
        %704 = vmatprep.subr.mxu0 0.0
        %705 = vmatpush1.msra.mxu0 0.0
        %706 = vmatprep.subr.mxu0 0.0
        %707 = vmatpush1.msra.mxu0 0.0
        %708 = vmatprep.subr.mxu0 0.0
        %709 = vmatpush1.msra.mxu0 0.0
        %710 = vmatprep.subr.mxu0 0.0
        %711 = vmatpush1.msra.mxu0 0.0
        %712 = vmatprep.subr.mxu0 0.0
        %713 = vmatpush1.msra.mxu0 0.0
        %714 = vmatprep.subr.mxu0 0.0
        %715 = vmatpush1.msra.mxu0 0.0
        %716 = vmatprep.subr.mxu0 0.0
        %717 = vmatpush1.msra.mxu0 0.0
        %718 = vmatprep.subr.mxu0 0.0
        %719 = vmatpush1.msra.mxu0 0.0
        %720 = vmatprep.subr.mxu0 0.0
        %721 = vmatpush1.msra.mxu0 0.0
        %722 = vmatprep.subr.mxu0 0.0
        %723 = vmatpush1.msra.mxu0 0.0
        %724 = vmatprep.subr.mxu0 0.0
        %725 = vmatpush1.msra.mxu0 0.0
        %726 = vmatprep.subr.mxu0 0.0
        %727 = vmatpush1.msra.mxu0 0.0
        %728 = vmatprep.subr.mxu0 0.0
        %729 = vmatpush1.msra.mxu0 0.0
        %730 = vmatprep.subr.mxu0 0.0
        %731 = vmatpush1.msra.mxu0 0.0
        %732 = vmatprep.subr.mxu0 0.0
        %733 = vmatpush1.msra.mxu0 0.0
        %734 = vmatprep.subr.mxu0 0.0
        %735 = vmatpush1.msra.mxu0 0.0
        %736 = vmatprep.subr.mxu0 0.0
        %737 = vmatpush1.msra.mxu0 0.0
        %738 = vmatprep.subr.mxu0 0.0
        %739 = vmatpush1.msra.mxu0 0.0
        %740 = vmatprep.mubr.f32.mxu0 0.0
        %741 = vmatmul.mubr.f32.gmra.mrb[0].mxu0 %v626
        %v742 = vpop.f32.mrb[0].mxu0
        %v743 = vadd.f32 0.0, %v742
        %v744 = vpop.f32.mrb[0].mxu0
        %745 = vmatprep.mubr.f32.mxu0 0.0
        %746 = vmatmul.mubr.f32.gmra.mrb[0].mxu0 %v629
        %v747 = vpop.f32.mrb[0].mxu0
        %v748 = vadd.f32 0.0, %v747
        %v749 = vpop.f32.mrb[0].mxu0
        %750 = vmatprep.mubr.f32.mxu0 0.0
        %751 = vmatmul.mubr.f32.gmra.mrb[0].mxu0 %v632
        %v752 = vpop.f32.mrb[0].mxu0
        %v753 = vadd.f32 0.0, %v752
        %v754 = vpop.f32.mrb[0].mxu0
        %755 = vmatprep.mubr.f32.mxu0 0.0
        %756 = vmatmul.mubr.f32.gmra.mrb[0].mxu0 %v635
        %v757 = vpop.f32.mrb[0].mxu0
        %v758 = vadd.f32 0.0, %v757
        %v759 = vpop.f32.mrb[0].mxu0
        %760 = vmatprep.mubr.f32.mxu0 0.0
        %761 = vmatmul.mubr.f32.gmra.mrb[0].mxu0 %v638
        %v762 = vpop.f32.mrb[0].mxu0
        %v763 = vadd.f32 0.0, %v762
        %v764 = vpop.f32.mrb[0].mxu0
        %765 = vmatprep.mubr.f32.mxu0 0.0
        %766 = vmatmul.mubr.f32.gmra.mrb[0].mxu0 %v641
        %v767 = vpop.f32.mrb[0].mxu0
        %v768 = vadd.f32 0.0, %v767
        %v769 = vpop.f32.mrb[0].mxu0
        %770 = vmatprep.mubr.f32.mxu0 0.0
        %771 = vmatmul.mubr.f32.gmra.mrb[0].mxu0 %v644
        %v772 = vpop.f32.mrb[0].mxu0
        %v773 = vadd.f32 0.0, %v772
        %v774 = vpop.f32.mrb[0].mxu0
        %775 = vmatprep.mubr.f32.mxu0 0.0
        %776 = vmatmul.mubr.f32.gmra.mrb[0].mxu0 %v647
        %v777 = vpop.f32.mrb[0].mxu0
        %v778 = vadd.f32 0.0, %v777
        %v779 = vpop.f32.mrb[0].mxu0
        %780 = vmatprep.mubr.f32.mxu0 0.0
        %781 = vmatmul.mubr.f32.gmra.mrb[0].mxu0 %v650
        %v782 = vpop.f32.mrb[0].mxu0
        %v783 = vadd.f32 0.0, %v782
        %v784 = vpop.f32.mrb[0].mxu0
        %785 = vmatprep.mubr.f32.mxu0 0.0
        %786 = vmatmul.mubr.f32.gmra.mrb[0].mxu0 %v653
        %v787 = vpop.f32.mrb[0].mxu0
        %v788 = vadd.f32 0.0, %v787
        %v789 = vpop.f32.mrb[0].mxu0
        %790 = vmatprep.mubr.f32.mxu0 0.0
        %791 = vmatmul.mubr.f32.gmra.mrb[0].mxu0 %v656
        %v792 = vpop.f32.mrb[0].mxu0
        %v793 = vadd.f32 0.0, %v792
        %v794 = vpop.f32.mrb[0].mxu0
        %795 = vmatprep.mubr.f32.mxu0 0.0
        %796 = vmatmul.mubr.f32.gmra.mrb[0].mxu0 %v659
        %v797 = vpop.f32.mrb[0].mxu0
        %v798 = vadd.f32 0.0, %v797
        %v799 = vpop.f32.mrb[0].mxu0
        %800 = vmatprep.mubr.f32.mxu0 0.0
        %801 = vmatmul.mubr.f32.gmra.mrb[0].mxu0 %v662
        %v802 = vpop.f32.mrb[0].mxu0
        %v803 = vadd.f32 0.0, %v802
        %v804 = vpop.f32.mrb[0].mxu0
        %805 = vmatprep.mubr.f32.mxu0 0.0
        %806 = vmatmul.mubr.f32.gmra.mrb[0].mxu0 %v665
        %v807 = vpop.f32.mrb[0].mxu0
        %v808 = vadd.f32 0.0, %v807
        %v809 = vpop.f32.mrb[0].mxu0
        %810 = vmatprep.mubr.f32.mxu0 0.0
        %811 = vmatmul.mubr.f32.gmra.mrb[0].mxu0 %v668
        %v812 = vpop.f32.mrb[0].mxu0
        %v813 = vadd.f32 0.0, %v812
        %v814 = vpop.f32.mrb[0].mxu0
        %815 = vmatprep.mubr.f32.mxu0 0.0
        %816 = vmatmul.mubr.f32.gmra.mrb[0].mxu0 %v671
        %v817 = vpop.f32.mrb[0].mxu0
        %v818 = vadd.f32 0.0, %v817
        %v819 = vpop.f32.mrb[0].mxu0
        %820 = vdwg.mxu0
        %v821 = vadd.f32 %v528, %v743
        %v822 = vadd.f32 %v533, %v748
        %v823 = vadd.f32 %v538, %v753
        %v824 = vadd.f32 %v543, %v758
        %v825 = vadd.f32 %v548, %v763
        %v826 = vadd.f32 %v553, %v768
        %v827 = vadd.f32 %v558, %v773
        %v828 = vadd.f32 %v563, %v778
        %v829 = vadd.f32 %v568, %v783
        %v830 = vadd.f32 %v573, %v788
        %v831 = vadd.f32 %v578, %v793
        %v832 = vadd.f32 %v583, %v798
        %v833 = vadd.f32 %v588, %v803
        %v834 = vadd.f32 %v593, %v808
        %v835 = vadd.f32 %v598, %v813
        %v836 = vadd.f32 %v603, %v818
        %s837 = scalar_lea.vmem %s172, 24
        %v838 = vld [vmem:[%s837] sm:$0xff]
        %v839 = vld [vmem:[%s837 + $0x20] sm:$0xff]
        %v840 = vld [vmem:[%s837 + $0x40] sm:$0xff]
        %v841 = vld [vmem:[%s837 + $0x60] sm:$0xff]
        %v842 = vld [vmem:[%s837 + $0x80] sm:$0xff]
        %v843 = vld [vmem:[%s837 + $0xa0] sm:$0xff]
        %v844 = vld [vmem:[%s837 + $0xc0] sm:$0xff]
        %v845 = vld [vmem:[%s837 + $0xe0] sm:$0xff]
        %v846 = vld [vmem:[%s837 + $0x100] sm:$0xff]
        %v847 = vld [vmem:[%s837 + $0x120] sm:$0xff]
        %v848 = vld [vmem:[%s837 + $0x140] sm:$0xff]
        %v849 = vld [vmem:[%s837 + $0x160] sm:$0xff]
        %v850 = vld [vmem:[%s837 + $0x180] sm:$0xff]
        %v851 = vld [vmem:[%s837 + $0x1a0] sm:$0xff]
        %v852 = vld [vmem:[%s837 + $0x1c0] sm:$0xff]
        %v853 = vld [vmem:[%s837 + $0x1e0] sm:$0xff]
        %v854 = vld [vmem:[%s1 + $0x60] sm:$0xff]
        %v855 = vld [vmem:[%s1 + $0x68] sm:$0x7f]
        %v857 = vsel %vm212, %v838, 0
        %v860 = vsel %vm212, %v839, 0
        %v863 = vsel %vm212, %v840, 0
        %v866 = vsel %vm212, %v841, 0
        %v869 = vsel %vm212, %v842, 0
        %v872 = vsel %vm212, %v843, 0
        %v875 = vsel %vm212, %v844, 0
        %v878 = vsel %vm212, %v845, 0
        %v881 = vsel %vm212, %v846, 0
        %v884 = vsel %vm212, %v847, 0
        %v887 = vsel %vm212, %v848, 0
        %v890 = vsel %vm212, %v849, 0
        %v893 = vsel %vm212, %v850, 0
        %v896 = vsel %vm212, %v851, 0
        %v899 = vsel %vm212, %v852, 0
        %v902 = vsel %vm212, %v853, 0
        %v905 = vsel %vm261, %v855, 0
        %907 = vmatprep.subr.mxu0 0.0
        %908 = vmatpush1.msra.mxu0 %v854
        %909 = vmatprep.subr.mxu0 0.0
        %910 = vmatpush1.msra.mxu0 %v905
        %911 = vmatprep.subr.mxu0 0.0
        %912 = vmatpush1.msra.mxu0 0.0
        %913 = vmatprep.subr.mxu0 0.0
        %914 = vmatpush1.msra.mxu0 0.0
        %915 = vmatprep.subr.mxu0 0.0
        %916 = vmatpush1.msra.mxu0 0.0
        %917 = vmatprep.subr.mxu0 0.0
        %918 = vmatpush1.msra.mxu0 0.0
        %919 = vmatprep.subr.mxu0 0.0
        %920 = vmatpush1.msra.mxu0 0.0
        %921 = vmatprep.subr.mxu0 0.0
        %922 = vmatpush1.msra.mxu0 0.0
        %923 = vmatprep.subr.mxu0 0.0
        %924 = vmatpush1.msra.mxu0 0.0
        %925 = vmatprep.subr.mxu0 0.0
        %926 = vmatpush1.msra.mxu0 0.0
        %927 = vmatprep.subr.mxu0 0.0
        %928 = vmatpush1.msra.mxu0 0.0
        %929 = vmatprep.subr.mxu0 0.0
        %930 = vmatpush1.msra.mxu0 0.0
        %931 = vmatprep.subr.mxu0 0.0
        %932 = vmatpush1.msra.mxu0 0.0
        %933 = vmatprep.subr.mxu0 0.0
        %934 = vmatpush1.msra.mxu0 0.0
        %935 = vmatprep.subr.mxu0 0.0
        %936 = vmatpush1.msra.mxu0 0.0
        %937 = vmatprep.subr.mxu0 0.0
        %938 = vmatpush1.msra.mxu0 0.0
        %939 = vmatprep.subr.mxu0 0.0
        %940 = vmatpush1.msra.mxu0 0.0
        %941 = vmatprep.subr.mxu0 0.0
        %942 = vmatpush1.msra.mxu0 0.0
        %943 = vmatprep.subr.mxu0 0.0
        %944 = vmatpush1.msra.mxu0 0.0
        %945 = vmatprep.subr.mxu0 0.0
        %946 = vmatpush1.msra.mxu0 0.0
        %947 = vmatprep.subr.mxu0 0.0
        %948 = vmatpush1.msra.mxu0 0.0
        %949 = vmatprep.subr.mxu0 0.0
        %950 = vmatpush1.msra.mxu0 0.0
        %951 = vmatprep.subr.mxu0 0.0
        %952 = vmatpush1.msra.mxu0 0.0
        %953 = vmatprep.subr.mxu0 0.0
        %954 = vmatpush1.msra.mxu0 0.0
        %955 = vmatprep.subr.mxu0 0.0
        %956 = vmatpush1.msra.mxu0 0.0
        %957 = vmatprep.subr.mxu0 0.0
        %958 = vmatpush1.msra.mxu0 0.0
        %959 = vmatprep.subr.mxu0 0.0
        %960 = vmatpush1.msra.mxu0 0.0
        %961 = vmatprep.subr.mxu0 0.0
        %962 = vmatpush1.msra.mxu0 0.0
        %963 = vmatprep.subr.mxu0 0.0
        %964 = vmatpush1.msra.mxu0 0.0
        %965 = vmatprep.subr.mxu0 0.0
        %966 = vmatpush1.msra.mxu0 0.0
        %967 = vmatprep.subr.mxu0 0.0
        %968 = vmatpush1.msra.mxu0 0.0
        %969 = vmatprep.subr.mxu0 0.0
        %970 = vmatpush1.msra.mxu0 0.0
        %971 = vmatprep.mubr.f32.mxu0 0.0
        %972 = vmatmul.mubr.f32.gmra.mrb[0].mxu0 %v857
        %v973 = vpop.f32.mrb[0].mxu0
        %v974 = vadd.f32 0.0, %v973
        %v975 = vpop.f32.mrb[0].mxu0
        %976 = vmatprep.mubr.f32.mxu0 0.0
        %977 = vmatmul.mubr.f32.gmra.mrb[0].mxu0 %v860
        %v978 = vpop.f32.mrb[0].mxu0
        %v979 = vadd.f32 0.0, %v978
        %v980 = vpop.f32.mrb[0].mxu0
        %981 = vmatprep.mubr.f32.mxu0 0.0
        %982 = vmatmul.mubr.f32.gmra.mrb[0].mxu0 %v863
        %v983 = vpop.f32.mrb[0].mxu0
        %v984 = vadd.f32 0.0, %v983
        %v985 = vpop.f32.mrb[0].mxu0
        %986 = vmatprep.mubr.f32.mxu0 0.0
        %987 = vmatmul.mubr.f32.gmra.mrb[0].mxu0 %v866
        %v988 = vpop.f32.mrb[0].mxu0
        %v989 = vadd.f32 0.0, %v988
        %v990 = vpop.f32.mrb[0].mxu0
        %991 = vmatprep.mubr.f32.mxu0 0.0
        %992 = vmatmul.mubr.f32.gmra.mrb[0].mxu0 %v869
        %v993 = vpop.f32.mrb[0].mxu0
        %v994 = vadd.f32 0.0, %v993
        %v995 = vpop.f32.mrb[0].mxu0
        %996 = vmatprep.mubr.f32.mxu0 0.0
        %997 = vmatmul.mubr.f32.gmra.mrb[0].mxu0 %v872
        %v998 = vpop.f32.mrb[0].mxu0
        %v999 = vadd.f32 0.0, %v998
        %v1000 = vpop.f32.mrb[0].mxu0
        %1001 = vmatprep.mubr.f32.mxu0 0.0
        %1002 = vmatmul.mubr.f32.gmra.mrb[0].mxu0 %v875
        %v1003 = vpop.f32.mrb[0].mxu0
        %v1004 = vadd.f32 0.0, %v1003
        %v1005 = vpop.f32.mrb[0].mxu0
        %1006 = vmatprep.mubr.f32.mxu0 0.0
        %1007 = vmatmul.mubr.f32.gmra.mrb[0].mxu0 %v878
        %v1008 = vpop.f32.mrb[0].mxu0
        %v1009 = vadd.f32 0.0, %v1008
        %v1010 = vpop.f32.mrb[0].mxu0
        %1011 = vmatprep.mubr.f32.mxu0 0.0
        %1012 = vmatmul.mubr.f32.gmra.mrb[0].mxu0 %v881
        %v1013 = vpop.f32.mrb[0].mxu0
        %v1014 = vadd.f32 0.0, %v1013
        %v1015 = vpop.f32.mrb[0].mxu0
        %1016 = vmatprep.mubr.f32.mxu0 0.0
        %1017 = vmatmul.mubr.f32.gmra.mrb[0].mxu0 %v884
        %v1018 = vpop.f32.mrb[0].mxu0
        %v1019 = vadd.f32 0.0, %v1018
        %v1020 = vpop.f32.mrb[0].mxu0
        %1021 = vmatprep.mubr.f32.mxu0 0.0
        %1022 = vmatmul.mubr.f32.gmra.mrb[0].mxu0 %v887
        %v1023 = vpop.f32.mrb[0].mxu0
        %v1024 = vadd.f32 0.0, %v1023
        %v1025 = vpop.f32.mrb[0].mxu0
        %1026 = vmatprep.mubr.f32.mxu0 0.0
        %1027 = vmatmul.mubr.f32.gmra.mrb[0].mxu0 %v890
        %v1028 = vpop.f32.mrb[0].mxu0
        %v1029 = vadd.f32 0.0, %v1028
        %v1030 = vpop.f32.mrb[0].mxu0
        %1031 = vmatprep.mubr.f32.mxu0 0.0
        %1032 = vmatmul.mubr.f32.gmra.mrb[0].mxu0 %v893
        %v1033 = vpop.f32.mrb[0].mxu0
        %v1034 = vadd.f32 0.0, %v1033
        %v1035 = vpop.f32.mrb[0].mxu0
        %1036 = vmatprep.mubr.f32.mxu0 0.0
        %1037 = vmatmul.mubr.f32.gmra.mrb[0].mxu0 %v896
        %v1038 = vpop.f32.mrb[0].mxu0
        %v1039 = vadd.f32 0.0, %v1038
        %v1040 = vpop.f32.mrb[0].mxu0
        %1041 = vmatprep.mubr.f32.mxu0 0.0
        %1042 = vmatmul.mubr.f32.gmra.mrb[0].mxu0 %v899
        %v1043 = vpop.f32.mrb[0].mxu0
        %v1044 = vadd.f32 0.0, %v1043
        %v1045 = vpop.f32.mrb[0].mxu0
        %1046 = vmatprep.mubr.f32.mxu0 0.0
        %1047 = vmatmul.mubr.f32.gmra.mrb[0].mxu0 %v902
        %v1048 = vpop.f32.mrb[0].mxu0
        %v1049 = vadd.f32 0.0, %v1048
        %v1050 = vpop.f32.mrb[0].mxu0
        %1051 = vdwg.mxu0
        %v1052 = vadd.f32 %v821, %v974
        %v1053 = vadd.f32 %v822, %v979
        %v1054 = vadd.f32 %v823, %v984
        %v1055 = vadd.f32 %v824, %v989
        %v1056 = vadd.f32 %v825, %v994
        %v1057 = vadd.f32 %v826, %v999
        %v1058 = vadd.f32 %v827, %v1004
        %v1059 = vadd.f32 %v828, %v1009
        %v1060 = vadd.f32 %v829, %v1014
        %v1061 = vadd.f32 %v830, %v1019
        %v1062 = vadd.f32 %v831, %v1024
        %v1063 = vadd.f32 %v832, %v1029
        %v1064 = vadd.f32 %v833, %v1034
        %v1065 = vadd.f32 %v834, %v1039
        %v1066 = vadd.f32 %v835, %v1044
        %v1067 = vadd.f32 %v836, %v1049
        %v1068 = vld [vmem:[%s2] sm:$0x1]
        %v1069 = vld [vmem:[%s2 + $0x1] sm:$0x1]
        %v1070 = vrot.slane %v1052, 4
        %v1071 = vadd.f32 %v1052, %v1070
        %v1072 = vrot.slane %v1071, 2
        %v1073 = vadd.f32 %v1071, %v1072
        %v1074 = vrot.slane %v1073, 1
        %v1075 = vadd.f32 %v1073, %v1074
        %v1076 = vrot.slane %v1053, 4
        %v1077 = vadd.f32 %v1053, %v1076
        %v1078 = vrot.slane %v1077, 2
        %v1079 = vadd.f32 %v1077, %v1078
        %v1080 = vrot.slane %v1079, 1
        %v1081 = vadd.f32 %v1079, %v1080
        %v1082 = vrot.slane %v1054, 4
        %v1083 = vadd.f32 %v1054, %v1082
        %v1084 = vrot.slane %v1083, 2
        %v1085 = vadd.f32 %v1083, %v1084
        %v1086 = vrot.slane %v1085, 1
        %v1087 = vadd.f32 %v1085, %v1086
        %v1088 = vrot.slane %v1055, 4
        %v1089 = vadd.f32 %v1055, %v1088
        %v1090 = vrot.slane %v1089, 2
        %v1091 = vadd.f32 %v1089, %v1090
        %v1092 = vrot.slane %v1091, 1
        %v1093 = vadd.f32 %v1091, %v1092
        %v1094 = vrot.slane %v1056, 4
        %v1095 = vadd.f32 %v1056, %v1094
        %v1096 = vrot.slane %v1095, 2
        %v1097 = vadd.f32 %v1095, %v1096
        %v1098 = vrot.slane %v1097, 1
        %v1099 = vadd.f32 %v1097, %v1098
        %v1100 = vrot.slane %v1057, 4
        %v1101 = vadd.f32 %v1057, %v1100
        %v1102 = vrot.slane %v1101, 2
        %v1103 = vadd.f32 %v1101, %v1102
        %v1104 = vrot.slane %v1103, 1
        %v1105 = vadd.f32 %v1103, %v1104
        %v1106 = vrot.slane %v1058, 4
        %v1107 = vadd.f32 %v1058, %v1106
        %v1108 = vrot.slane %v1107, 2
        %v1109 = vadd.f32 %v1107, %v1108
        %v1110 = vrot.slane %v1109, 1
        %v1111 = vadd.f32 %v1109, %v1110
        %v1112 = vrot.slane %v1059, 4
        %v1113 = vadd.f32 %v1059, %v1112
        %v1114 = vrot.slane %v1113, 2
        %v1115 = vadd.f32 %v1113, %v1114
        %v1116 = vrot.slane %v1115, 1
        %v1117 = vadd.f32 %v1115, %v1116
        %v1118 = vrot.slane %v1060, 4
        %v1119 = vadd.f32 %v1060, %v1118
        %v1120 = vrot.slane %v1119, 2
        %v1121 = vadd.f32 %v1119, %v1120
        %v1122 = vrot.slane %v1121, 1
        %v1123 = vadd.f32 %v1121, %v1122
        %v1124 = vrot.slane %v1061, 4
        %v1125 = vadd.f32 %v1061, %v1124
        %v1126 = vrot.slane %v1125, 2
        %v1127 = vadd.f32 %v1125, %v1126
        %v1128 = vrot.slane %v1127, 1
        %v1129 = vadd.f32 %v1127, %v1128
        %v1130 = vrot.slane %v1062, 4
        %v1131 = vadd.f32 %v1062, %v1130
        %v1132 = vrot.slane %v1131, 2
        %v1133 = vadd.f32 %v1131, %v1132
        %v1134 = vrot.slane %v1133, 1
        %v1135 = vadd.f32 %v1133, %v1134
        %v1136 = vrot.slane %v1063, 4
        %v1137 = vadd.f32 %v1063, %v1136
        %v1138 = vrot.slane %v1137, 2
        %v1139 = vadd.f32 %v1137, %v1138
        %v1140 = vrot.slane %v1139, 1
        %v1141 = vadd.f32 %v1139, %v1140
        %v1142 = vrot.slane %v1064, 4
        %v1143 = vadd.f32 %v1064, %v1142
        %v1144 = vrot.slane %v1143, 2
        %v1145 = vadd.f32 %v1143, %v1144
        %v1146 = vrot.slane %v1145, 1
        %v1147 = vadd.f32 %v1145, %v1146
        %v1148 = vrot.slane %v1065, 4
        %v1149 = vadd.f32 %v1065, %v1148
        %v1150 = vrot.slane %v1149, 2
        %v1151 = vadd.f32 %v1149, %v1150
        %v1152 = vrot.slane %v1151, 1
        %v1153 = vadd.f32 %v1151, %v1152
        %v1154 = vrot.slane %v1066, 4
        %v1155 = vadd.f32 %v1066, %v1154
        %v1156 = vrot.slane %v1155, 2
        %v1157 = vadd.f32 %v1155, %v1156
        %v1158 = vrot.slane %v1157, 1
        %v1159 = vadd.f32 %v1157, %v1158
        %v1160 = vrot.slane %v1067, 4
        %v1161 = vadd.f32 %v1067, %v1160
        %v1162 = vrot.slane %v1161, 2
        %v1163 = vadd.f32 %v1161, %v1162
        %v1164 = vrot.slane %v1163, 1
        %v1165 = vadd.f32 %v1163, %v1164
        %v1166 = vrcp.pop 8.0
        %v1167 = vmul.f32 %v1075, %v1166
        %v1168 = vmul.f32 %v1081, %v1166
        %v1169 = vmul.f32 %v1087, %v1166
        %v1170 = vmul.f32 %v1093, %v1166
        %v1171 = vmul.f32 %v1099, %v1166
        %v1172 = vmul.f32 %v1105, %v1166
        %v1173 = vmul.f32 %v1111, %v1166
        %v1174 = vmul.f32 %v1117, %v1166
        %v1175 = vmul.f32 %v1123, %v1166
        %v1176 = vmul.f32 %v1129, %v1166
        %v1177 = vmul.f32 %v1135, %v1166
        %v1178 = vmul.f32 %v1141, %v1166
        %v1179 = vmul.f32 %v1147, %v1166
        %v1180 = vmul.f32 %v1153, %v1166
        %v1181 = vmul.f32 %v1159, %v1166
        %v1182 = vmul.f32 %v1165, %v1166
        %v1183 = vsub.f32 %v1052, %v1167
        %v1184 = vsub.f32 %v1053, %v1168
        %v1185 = vsub.f32 %v1054, %v1169
        %v1186 = vsub.f32 %v1055, %v1170
        %v1187 = vsub.f32 %v1056, %v1171
        %v1188 = vsub.f32 %v1057, %v1172
        %v1189 = vsub.f32 %v1058, %v1173
        %v1190 = vsub.f32 %v1059, %v1174
        %v1191 = vsub.f32 %v1060, %v1175
        %v1192 = vsub.f32 %v1061, %v1176
        %v1193 = vsub.f32 %v1062, %v1177
        %v1194 = vsub.f32 %v1063, %v1178
        %v1195 = vsub.f32 %v1064, %v1179
        %v1196 = vsub.f32 %v1065, %v1180
        %v1197 = vsub.f32 %v1066, %v1181
        %v1198 = vsub.f32 %v1067, %v1182
        %v1199 = vmul.f32 %v1183, %v1183
        %v1200 = vmul.f32 %v1184, %v1184
        %v1201 = vmul.f32 %v1185, %v1185
        %v1202 = vmul.f32 %v1186, %v1186
        %v1203 = vmul.f32 %v1187, %v1187
        %v1204 = vmul.f32 %v1188, %v1188
        %v1205 = vmul.f32 %v1189, %v1189
        %v1206 = vmul.f32 %v1190, %v1190
        %v1207 = vmul.f32 %v1191, %v1191
        %v1208 = vmul.f32 %v1192, %v1192
        %v1209 = vmul.f32 %v1193, %v1193
        %v1210 = vmul.f32 %v1194, %v1194
        %v1211 = vmul.f32 %v1195, %v1195
        %v1212 = vmul.f32 %v1196, %v1196
        %v1213 = vmul.f32 %v1197, %v1197
        %v1214 = vmul.f32 %v1198, %v1198
        %v1215 = vrot.slane %v1199, 4
        %v1216 = vadd.f32 %v1199, %v1215
        %v1217 = vrot.slane %v1216, 2
        %v1218 = vadd.f32 %v1216, %v1217
        %v1219 = vrot.slane %v1218, 1
        %v1220 = vadd.f32 %v1218, %v1219
        %v1221 = vrot.slane %v1200, 4
        %v1222 = vadd.f32 %v1200, %v1221
        %v1223 = vrot.slane %v1222, 2
        %v1224 = vadd.f32 %v1222, %v1223
        %v1225 = vrot.slane %v1224, 1
        %v1226 = vadd.f32 %v1224, %v1225
        %v1227 = vrot.slane %v1201, 4
        %v1228 = vadd.f32 %v1201, %v1227
        %v1229 = vrot.slane %v1228, 2
        %v1230 = vadd.f32 %v1228, %v1229
        %v1231 = vrot.slane %v1230, 1
        %v1232 = vadd.f32 %v1230, %v1231
        %v1233 = vrot.slane %v1202, 4
        %v1234 = vadd.f32 %v1202, %v1233
        %v1235 = vrot.slane %v1234, 2
        %v1236 = vadd.f32 %v1234, %v1235
        %v1237 = vrot.slane %v1236, 1
        %v1238 = vadd.f32 %v1236, %v1237
        %v1239 = vrot.slane %v1203, 4
        %v1240 = vadd.f32 %v1203, %v1239
        %v1241 = vrot.slane %v1240, 2
        %v1242 = vadd.f32 %v1240, %v1241
        %v1243 = vrot.slane %v1242, 1
        %v1244 = vadd.f32 %v1242, %v1243
        %v1245 = vrot.slane %v1204, 4
        %v1246 = vadd.f32 %v1204, %v1245
        %v1247 = vrot.slane %v1246, 2
        %v1248 = vadd.f32 %v1246, %v1247
        %v1249 = vrot.slane %v1248, 1
        %v1250 = vadd.f32 %v1248, %v1249
        %v1251 = vrot.slane %v1205, 4
        %v1252 = vadd.f32 %v1205, %v1251
        %v1253 = vrot.slane %v1252, 2
        %v1254 = vadd.f32 %v1252, %v1253
        %v1255 = vrot.slane %v1254, 1
        %v1256 = vadd.f32 %v1254, %v1255
        %v1257 = vrot.slane %v1206, 4
        %v1258 = vadd.f32 %v1206, %v1257
        %v1259 = vrot.slane %v1258, 2
        %v1260 = vadd.f32 %v1258, %v1259
        %v1261 = vrot.slane %v1260, 1
        %v1262 = vadd.f32 %v1260, %v1261
        %v1263 = vrot.slane %v1207, 4
        %v1264 = vadd.f32 %v1207, %v1263
        %v1265 = vrot.slane %v1264, 2
        %v1266 = vadd.f32 %v1264, %v1265
        %v1267 = vrot.slane %v1266, 1
        %v1268 = vadd.f32 %v1266, %v1267
        %v1269 = vrot.slane %v1208, 4
        %v1270 = vadd.f32 %v1208, %v1269
        %v1271 = vrot.slane %v1270, 2
        %v1272 = vadd.f32 %v1270, %v1271
        %v1273 = vrot.slane %v1272, 1
        %v1274 = vadd.f32 %v1272, %v1273
        %v1275 = vrot.slane %v1209, 4
        %v1276 = vadd.f32 %v1209, %v1275
        %v1277 = vrot.slane %v1276, 2
        %v1278 = vadd.f32 %v1276, %v1277
        %v1279 = vrot.slane %v1278, 1
        %v1280 = vadd.f32 %v1278, %v1279
        %v1281 = vrot.slane %v1210, 4
        %v1282 = vadd.f32 %v1210, %v1281
        %v1283 = vrot.slane %v1282, 2
        %v1284 = vadd.f32 %v1282, %v1283
        %v1285 = vrot.slane %v1284, 1
        %v1286 = vadd.f32 %v1284, %v1285
        %v1287 = vrot.slane %v1211, 4
        %v1288 = vadd.f32 %v1211, %v1287
        %v1289 = vrot.slane %v1288, 2
        %v1290 = vadd.f32 %v1288, %v1289
        %v1291 = vrot.slane %v1290, 1
        %v1292 = vadd.f32 %v1290, %v1291
        %v1293 = vrot.slane %v1212, 4
        %v1294 = vadd.f32 %v1212, %v1293
        %v1295 = vrot.slane %v1294, 2
        %v1296 = vadd.f32 %v1294, %v1295
        %v1297 = vrot.slane %v1296, 1
        %v1298 = vadd.f32 %v1296, %v1297
        %v1299 = vrot.slane %v1213, 4
        %v1300 = vadd.f32 %v1213, %v1299
        %v1301 = vrot.slane %v1300, 2
        %v1302 = vadd.f32 %v1300, %v1301
        %v1303 = vrot.slane %v1302, 1
        %v1304 = vadd.f32 %v1302, %v1303
        %v1305 = vrot.slane %v1214, 4
        %v1306 = vadd.f32 %v1214, %v1305
        %v1307 = vrot.slane %v1306, 2
        %v1308 = vadd.f32 %v1306, %v1307
        %v1309 = vrot.slane %v1308, 1
        %v1310 = vadd.f32 %v1308, %v1309
        %v1311 = vmul.f32 %v1220, %v1166
        %v1312 = vmul.f32 %v1226, %v1166
        %v1313 = vmul.f32 %v1232, %v1166
        %v1314 = vmul.f32 %v1238, %v1166
        %v1315 = vmul.f32 %v1244, %v1166
        %v1316 = vmul.f32 %v1250, %v1166
        %v1317 = vmul.f32 %v1256, %v1166
        %v1318 = vmul.f32 %v1262, %v1166
        %v1319 = vmul.f32 %v1268, %v1166
        %v1320 = vmul.f32 %v1274, %v1166
        %v1321 = vmul.f32 %v1280, %v1166
        %v1322 = vmul.f32 %v1286, %v1166
        %v1323 = vmul.f32 %v1292, %v1166
        %v1324 = vmul.f32 %v1298, %v1166
        %v1325 = vmul.f32 %v1304, %v1166
        %v1326 = vmul.f32 %v1310, %v1166
        %v1327 = vadd.f32 %v1311, 1e-05
        %v1328 = vadd.f32 %v1312, 1e-05
        %v1329 = vadd.f32 %v1313, 1e-05
        %v1330 = vadd.f32 %v1314, 1e-05
        %v1331 = vadd.f32 %v1315, 1e-05
        %v1332 = vadd.f32 %v1316, 1e-05
        %v1333 = vadd.f32 %v1317, 1e-05
        %v1334 = vadd.f32 %v1318, 1e-05
        %v1335 = vadd.f32 %v1319, 1e-05
        %v1336 = vadd.f32 %v1320, 1e-05
        %v1337 = vadd.f32 %v1321, 1e-05
        %v1338 = vadd.f32 %v1322, 1e-05
        %v1339 = vadd.f32 %v1323, 1e-05
        %v1340 = vadd.f32 %v1324, 1e-05
        %v1341 = vadd.f32 %v1325, 1e-05
        %v1342 = vadd.f32 %v1326, 1e-05
        %v1343 = vrsqrt.pop %v1327
        %v1344 = vrsqrt.pop %v1328
        %v1345 = vrsqrt.pop %v1329
        %v1346 = vrsqrt.pop %v1330
        %v1347 = vrsqrt.pop %v1331
        %v1348 = vrsqrt.pop %v1332
        %v1349 = vrsqrt.pop %v1333
        %v1350 = vrsqrt.pop %v1334
        %v1351 = vrsqrt.pop %v1335
        %v1352 = vrsqrt.pop %v1336
        %v1353 = vrsqrt.pop %v1337
        %v1354 = vrsqrt.pop %v1338
        %v1355 = vrsqrt.pop %v1339
        %v1356 = vrsqrt.pop %v1340
        %v1357 = vrsqrt.pop %v1341
        %v1358 = vrsqrt.pop %v1342
        %v1359 = vmul.f32 %v1068, %v1343
        %v1360 = vmul.f32 %v1068, %v1344
        %v1361 = vmul.f32 %v1068, %v1345
        %v1362 = vmul.f32 %v1068, %v1346
        %v1363 = vmul.f32 %v1068, %v1347
        %v1364 = vmul.f32 %v1068, %v1348
        %v1365 = vmul.f32 %v1068, %v1349
        %v1366 = vmul.f32 %v1068, %v1350
        %v1367 = vmul.f32 %v1068, %v1351
        %v1368 = vmul.f32 %v1068, %v1352
        %v1369 = vmul.f32 %v1068, %v1353
        %v1370 = vmul.f32 %v1068, %v1354
        %v1371 = vmul.f32 %v1068, %v1355
        %v1372 = vmul.f32 %v1068, %v1356
        %v1373 = vmul.f32 %v1068, %v1357
        %v1374 = vmul.f32 %v1068, %v1358
        %v1375 = vlaneseq
        %v1376 = vshrl.u32 %v1375, 7
        %v1377 = vsub.s32 0, %v1376
        %v1378 = vrot.slane %v1359, %v1377
        %v1379 = vlaneseq
        %v1380 = vshrl.u32 %v1379, 7
        %v1381 = vsub.s32 0, %v1380
        %v1382 = vrot.slane %v1360, %v1381
        %v1383 = vlaneseq
        %v1384 = vshrl.u32 %v1383, 7
        %v1385 = vsub.s32 0, %v1384
        %v1386 = vrot.slane %v1361, %v1385
        %v1387 = vlaneseq
        %v1388 = vshrl.u32 %v1387, 7
        %v1389 = vsub.s32 0, %v1388
        %v1390 = vrot.slane %v1362, %v1389
        %v1391 = vlaneseq
        %v1392 = vshrl.u32 %v1391, 7
        %v1393 = vsub.s32 0, %v1392
        %v1394 = vrot.slane %v1363, %v1393
        %v1395 = vlaneseq
        %v1396 = vshrl.u32 %v1395, 7
        %v1397 = vsub.s32 0, %v1396
        %v1398 = vrot.slane %v1364, %v1397
        %v1399 = vlaneseq
        %v1400 = vshrl.u32 %v1399, 7
        %v1401 = vsub.s32 0, %v1400
        %v1402 = vrot.slane %v1365, %v1401
        %v1403 = vlaneseq
        %v1404 = vshrl.u32 %v1403, 7
        %v1405 = vsub.s32 0, %v1404
        %v1406 = vrot.slane %v1366, %v1405
        %v1407 = vlaneseq
        %v1408 = vshrl.u32 %v1407, 7
        %v1409 = vsub.s32 0, %v1408
        %v1410 = vrot.slane %v1367, %v1409
        %v1411 = vlaneseq
        %v1412 = vshrl.u32 %v1411, 7
        %v1413 = vsub.s32 0, %v1412
        %v1414 = vrot.slane %v1368, %v1413
        %v1415 = vlaneseq
        %v1416 = vshrl.u32 %v1415, 7
        %v1417 = vsub.s32 0, %v1416
        %v1418 = vrot.slane %v1369, %v1417
        %v1419 = vlaneseq
        %v1420 = vshrl.u32 %v1419, 7
        %v1421 = vsub.s32 0, %v1420
        %v1422 = vrot.slane %v1370, %v1421
        %v1423 = vlaneseq
        %v1424 = vshrl.u32 %v1423, 7
        %v1425 = vsub.s32 0, %v1424
        %v1426 = vrot.slane %v1371, %v1425
        %v1427 = vlaneseq
        %v1428 = vshrl.u32 %v1427, 7
        %v1429 = vsub.s32 0, %v1428
        %v1430 = vrot.slane %v1372, %v1429
        %v1431 = vlaneseq
        %v1432 = vshrl.u32 %v1431, 7
        %v1433 = vsub.s32 0, %v1432
        %v1434 = vrot.slane %v1373, %v1433
        %v1435 = vlaneseq
        %v1436 = vshrl.u32 %v1435, 7
        %v1437 = vsub.s32 0, %v1436
        %v1438 = vrot.slane %v1374, %v1437
        %v1439 = vmul.f32 %v1183, %v1378
        %v1440 = vmul.f32 %v1184, %v1382
        %v1441 = vmul.f32 %v1185, %v1386
        %v1442 = vmul.f32 %v1186, %v1390
        %v1443 = vmul.f32 %v1187, %v1394
        %v1444 = vmul.f32 %v1188, %v1398
        %v1445 = vmul.f32 %v1189, %v1402
        %v1446 = vmul.f32 %v1190, %v1406
        %v1447 = vmul.f32 %v1191, %v1410
        %v1448 = vmul.f32 %v1192, %v1414
        %v1449 = vmul.f32 %v1193, %v1418
        %v1450 = vmul.f32 %v1194, %v1422
        %v1451 = vmul.f32 %v1195, %v1426
        %v1452 = vmul.f32 %v1196, %v1430
        %v1453 = vmul.f32 %v1197, %v1434
        %v1454 = vmul.f32 %v1198, %v1438
        %v1455 = vlaneseq
        %v1456 = vshrl.u32 %v1455, 7
        %v1457 = vsub.s32 0, %v1456
        %v1458 = vrot.slane %v1069, %v1457
        %v1459 = vadd.f32 %v1439, %v1458
        %v1460 = vadd.f32 %v1440, %v1458
        %v1461 = vadd.f32 %v1441, %v1458
        %v1462 = vadd.f32 %v1442, %v1458
        %v1463 = vadd.f32 %v1443, %v1458
        %v1464 = vadd.f32 %v1444, %v1458
        %v1465 = vadd.f32 %v1445, %v1458
        %v1466 = vadd.f32 %v1446, %v1458
        %v1467 = vadd.f32 %v1447, %v1458
        %v1468 = vadd.f32 %v1448, %v1458
        %v1469 = vadd.f32 %v1449, %v1458
        %v1470 = vadd.f32 %v1450, %v1458
        %v1471 = vadd.f32 %v1451, %v1458
        %v1472 = vadd.f32 %v1452, %v1458
        %v1473 = vadd.f32 %v1453, %v1458
        %v1474 = vadd.f32 %v1454, %v1458
        %v1475 = vmax.f32 %v1459, 0.0
        %v1476 = vmax.f32 %v1460, 0.0
        %v1477 = vmax.f32 %v1461, 0.0
        %v1478 = vmax.f32 %v1462, 0.0
        %v1479 = vmax.f32 %v1463, 0.0
        %v1480 = vmax.f32 %v1464, 0.0
        %v1481 = vmax.f32 %v1465, 0.0
        %v1482 = vmax.f32 %v1466, 0.0
        %v1483 = vmax.f32 %v1467, 0.0
        %v1484 = vmax.f32 %v1468, 0.0
        %v1485 = vmax.f32 %v1469, 0.0
        %v1486 = vmax.f32 %v1470, 0.0
        %v1487 = vmax.f32 %v1471, 0.0
        %v1488 = vmax.f32 %v1472, 0.0
        %v1489 = vmax.f32 %v1473, 0.0
        %v1490 = vmax.f32 %v1474, 0.0
        %v1491 = vld [vmem:[%s1 + $0x80] sm:$0xff]
        %v1492 = vld [vmem:[%s1 + $0x88] sm:$0xff]
        %v1493 = vld [vmem:[%s1 + $0x90] sm:$0xff]
        %v1494 = vld [vmem:[%s1 + $0x98] sm:$0xff]
        %v1495 = vld [vmem:[%s1 + $0xa0] sm:$0xff]
        %v1496 = vld [vmem:[%s1 + $0xa8] sm:$0xff]
        %v1497 = vld [vmem:[%s1 + $0xb0] sm:$0xff]
        %v1498 = vld [vmem:[%s1 + $0xb8] sm:$0xff]
        %v1499 = vld [vmem:[%s1 + $0xc0] sm:$0xff]
        %v1500 = vld [vmem:[%s1 + $0xc8] sm:$0xff]
        %v1501 = vld [vmem:[%s1 + $0xd0] sm:$0xff]
        %v1502 = vld [vmem:[%s1 + $0xd8] sm:$0xff]
        %v1503 = vld [vmem:[%s1 + $0xe0] sm:$0xff]
        %v1504 = vld [vmem:[%s1 + $0xe8] sm:$0xff]
        %v1505 = vld [vmem:[%s1 + $0xf0] sm:$0xff]
        %v1506 = vld [vmem:[%s1 + $0xf8] sm:$0xff]
        %1507 = vmatprep.subr.mxu0 0.0
        %1508 = vmatpush1.msra.mxu0 %v1491
        %1509 = vmatprep.subr.mxu0 0.0
        %1510 = vmatpush1.msra.mxu0 %v1492
        %1511 = vmatprep.subr.mxu0 0.0
        %1512 = vmatpush1.msra.mxu0 %v1493
        %1513 = vmatprep.subr.mxu0 0.0
        %1514 = vmatpush1.msra.mxu0 %v1494
        %1515 = vmatprep.subr.mxu0 0.0
        %1516 = vmatpush1.msra.mxu0 %v1495
        %1517 = vmatprep.subr.mxu0 0.0
        %1518 = vmatpush1.msra.mxu0 %v1496
        %1519 = vmatprep.subr.mxu0 0.0
        %1520 = vmatpush1.msra.mxu0 %v1497
        %1521 = vmatprep.subr.mxu0 0.0
        %1522 = vmatpush1.msra.mxu0 %v1498
        %1523 = vmatprep.subr.mxu0 0.0
        %1524 = vmatpush1.msra.mxu0 %v1499
        %1525 = vmatprep.subr.mxu0 0.0
        %1526 = vmatpush1.msra.mxu0 %v1500
        %1527 = vmatprep.subr.mxu0 0.0
        %1528 = vmatpush1.msra.mxu0 %v1501
        %1529 = vmatprep.subr.mxu0 0.0
        %1530 = vmatpush1.msra.mxu0 %v1502
        %1531 = vmatprep.subr.mxu0 0.0
        %1532 = vmatpush1.msra.mxu0 %v1503
        %1533 = vmatprep.subr.mxu0 0.0
        %1534 = vmatpush1.msra.mxu0 %v1504
        %1535 = vmatprep.subr.mxu0 0.0
        %1536 = vmatpush1.msra.mxu0 %v1505
        %1537 = vmatprep.subr.mxu0 0.0
        %1538 = vmatpush1.msra.mxu0 %v1506
        %1539 = vmatprep.subr.mxu0 0.0
        %1540 = vmatpush1.msra.mxu0 0.0
        %1541 = vmatprep.subr.mxu0 0.0
        %1542 = vmatpush1.msra.mxu0 0.0
        %1543 = vmatprep.subr.mxu0 0.0
        %1544 = vmatpush1.msra.mxu0 0.0
        %1545 = vmatprep.subr.mxu0 0.0
        %1546 = vmatpush1.msra.mxu0 0.0
        %1547 = vmatprep.subr.mxu0 0.0
        %1548 = vmatpush1.msra.mxu0 0.0
        %1549 = vmatprep.subr.mxu0 0.0
        %1550 = vmatpush1.msra.mxu0 0.0
        %1551 = vmatprep.subr.mxu0 0.0
        %1552 = vmatpush1.msra.mxu0 0.0
        %1553 = vmatprep.subr.mxu0 0.0
        %1554 = vmatpush1.msra.mxu0 0.0
        %1555 = vmatprep.subr.mxu0 0.0
        %1556 = vmatpush1.msra.mxu0 0.0
        %1557 = vmatprep.subr.mxu0 0.0
        %1558 = vmatpush1.msra.mxu0 0.0
        %1559 = vmatprep.subr.mxu0 0.0
        %1560 = vmatpush1.msra.mxu0 0.0
        %1561 = vmatprep.subr.mxu0 0.0
        %1562 = vmatpush1.msra.mxu0 0.0
        %1563 = vmatprep.subr.mxu0 0.0
        %1564 = vmatpush1.msra.mxu0 0.0
        %1565 = vmatprep.subr.mxu0 0.0
        %1566 = vmatpush1.msra.mxu0 0.0
        %1567 = vmatprep.subr.mxu0 0.0
        %1568 = vmatpush1.msra.mxu0 0.0
        %1569 = vmatprep.subr.mxu0 0.0
        %1570 = vmatpush1.msra.mxu0 0.0
        %1571 = vmatprep.mubr.f32.mxu0 0.0
        %1572 = vmatmul.mubr.f32.gmra.mrb[0].mxu0 %v1475
        %v1573 = vpop.f32.mrb[0].mxu0
        %v1574 = vadd.f32 0.0, %v1573
        %v1575 = vpop.f32.mrb[0].mxu0
        %1576 = vmatprep.mubr.f32.mxu0 0.0
        %1577 = vmatmul.mubr.f32.gmra.mrb[0].mxu0 %v1476
        %v1578 = vpop.f32.mrb[0].mxu0
        %v1579 = vadd.f32 0.0, %v1578
        %v1580 = vpop.f32.mrb[0].mxu0
        %1581 = vmatprep.mubr.f32.mxu0 0.0
        %1582 = vmatmul.mubr.f32.gmra.mrb[0].mxu0 %v1477
        %v1583 = vpop.f32.mrb[0].mxu0
        %v1584 = vadd.f32 0.0, %v1583
        %v1585 = vpop.f32.mrb[0].mxu0
        %1586 = vmatprep.mubr.f32.mxu0 0.0
        %1587 = vmatmul.mubr.f32.gmra.mrb[0].mxu0 %v1478
        %v1588 = vpop.f32.mrb[0].mxu0
        %v1589 = vadd.f32 0.0, %v1588
        %v1590 = vpop.f32.mrb[0].mxu0
        %1591 = vmatprep.mubr.f32.mxu0 0.0
        %1592 = vmatmul.mubr.f32.gmra.mrb[0].mxu0 %v1479
        %v1593 = vpop.f32.mrb[0].mxu0
        %v1594 = vadd.f32 0.0, %v1593
        %v1595 = vpop.f32.mrb[0].mxu0
        %1596 = vmatprep.mubr.f32.mxu0 0.0
        %1597 = vmatmul.mubr.f32.gmra.mrb[0].mxu0 %v1480
        %v1598 = vpop.f32.mrb[0].mxu0
        %v1599 = vadd.f32 0.0, %v1598
        %v1600 = vpop.f32.mrb[0].mxu0
        %1601 = vmatprep.mubr.f32.mxu0 0.0
        %1602 = vmatmul.mubr.f32.gmra.mrb[0].mxu0 %v1481
        %v1603 = vpop.f32.mrb[0].mxu0
        %v1604 = vadd.f32 0.0, %v1603
        %v1605 = vpop.f32.mrb[0].mxu0
        %1606 = vmatprep.mubr.f32.mxu0 0.0
        %1607 = vmatmul.mubr.f32.gmra.mrb[0].mxu0 %v1482
        %v1608 = vpop.f32.mrb[0].mxu0
        %v1609 = vadd.f32 0.0, %v1608
        %v1610 = vpop.f32.mrb[0].mxu0
        %1611 = vmatprep.mubr.f32.mxu0 0.0
        %1612 = vmatmul.mubr.f32.gmra.mrb[0].mxu0 %v1483
        %v1613 = vpop.f32.mrb[0].mxu0
        %v1614 = vadd.f32 0.0, %v1613
        %v1615 = vpop.f32.mrb[0].mxu0
        %1616 = vmatprep.mubr.f32.mxu0 0.0
        %1617 = vmatmul.mubr.f32.gmra.mrb[0].mxu0 %v1484
        %v1618 = vpop.f32.mrb[0].mxu0
        %v1619 = vadd.f32 0.0, %v1618
        %v1620 = vpop.f32.mrb[0].mxu0
        %1621 = vmatprep.mubr.f32.mxu0 0.0
        %1622 = vmatmul.mubr.f32.gmra.mrb[0].mxu0 %v1485
        %v1623 = vpop.f32.mrb[0].mxu0
        %v1624 = vadd.f32 0.0, %v1623
        %v1625 = vpop.f32.mrb[0].mxu0
        %1626 = vmatprep.mubr.f32.mxu0 0.0
        %1627 = vmatmul.mubr.f32.gmra.mrb[0].mxu0 %v1486
        %v1628 = vpop.f32.mrb[0].mxu0
        %v1629 = vadd.f32 0.0, %v1628
        %v1630 = vpop.f32.mrb[0].mxu0
        %1631 = vmatprep.mubr.f32.mxu0 0.0
        %1632 = vmatmul.mubr.f32.gmra.mrb[0].mxu0 %v1487
        %v1633 = vpop.f32.mrb[0].mxu0
        %v1634 = vadd.f32 0.0, %v1633
        %v1635 = vpop.f32.mrb[0].mxu0
        %1636 = vmatprep.mubr.f32.mxu0 0.0
        %1637 = vmatmul.mubr.f32.gmra.mrb[0].mxu0 %v1488
        %v1638 = vpop.f32.mrb[0].mxu0
        %v1639 = vadd.f32 0.0, %v1638
        %v1640 = vpop.f32.mrb[0].mxu0
        %1641 = vmatprep.mubr.f32.mxu0 0.0
        %1642 = vmatmul.mubr.f32.gmra.mrb[0].mxu0 %v1489
        %v1643 = vpop.f32.mrb[0].mxu0
        %v1644 = vadd.f32 0.0, %v1643
        %v1645 = vpop.f32.mrb[0].mxu0
        %1646 = vmatprep.mubr.f32.mxu0 0.0
        %1647 = vmatmul.mubr.f32.gmra.mrb[0].mxu0 %v1490
        %v1648 = vpop.f32.mrb[0].mxu0
        %v1649 = vadd.f32 0.0, %v1648
        %v1650 = vpop.f32.mrb[0].mxu0
        %1651 = vdwg.mxu0
        %v1652 = vld [vmem:[%s2 + $0x2] sm:$0x1]
        %v1653 = vld [vmem:[%s2 + $0x3] sm:$0x1]
        %v1654 = vrot.slane %v1574, 4
        %v1655 = vadd.f32 %v1574, %v1654
        %v1656 = vrot.slane %v1655, 2
        %v1657 = vadd.f32 %v1655, %v1656
        %v1658 = vrot.slane %v1657, 1
        %v1659 = vadd.f32 %v1657, %v1658
        %v1660 = vrot.slane %v1579, 4
        %v1661 = vadd.f32 %v1579, %v1660
        %v1662 = vrot.slane %v1661, 2
        %v1663 = vadd.f32 %v1661, %v1662
        %v1664 = vrot.slane %v1663, 1
        %v1665 = vadd.f32 %v1663, %v1664
        %v1666 = vrot.slane %v1584, 4
        %v1667 = vadd.f32 %v1584, %v1666
        %v1668 = vrot.slane %v1667, 2
        %v1669 = vadd.f32 %v1667, %v1668
        %v1670 = vrot.slane %v1669, 1
        %v1671 = vadd.f32 %v1669, %v1670
        %v1672 = vrot.slane %v1589, 4
        %v1673 = vadd.f32 %v1589, %v1672
        %v1674 = vrot.slane %v1673, 2
        %v1675 = vadd.f32 %v1673, %v1674
        %v1676 = vrot.slane %v1675, 1
        %v1677 = vadd.f32 %v1675, %v1676
        %v1678 = vrot.slane %v1594, 4
        %v1679 = vadd.f32 %v1594, %v1678
        %v1680 = vrot.slane %v1679, 2
        %v1681 = vadd.f32 %v1679, %v1680
        %v1682 = vrot.slane %v1681, 1
        %v1683 = vadd.f32 %v1681, %v1682
        %v1684 = vrot.slane %v1599, 4
        %v1685 = vadd.f32 %v1599, %v1684
        %v1686 = vrot.slane %v1685, 2
        %v1687 = vadd.f32 %v1685, %v1686
        %v1688 = vrot.slane %v1687, 1
        %v1689 = vadd.f32 %v1687, %v1688
        %v1690 = vrot.slane %v1604, 4
        %v1691 = vadd.f32 %v1604, %v1690
        %v1692 = vrot.slane %v1691, 2
        %v1693 = vadd.f32 %v1691, %v1692
        %v1694 = vrot.slane %v1693, 1
        %v1695 = vadd.f32 %v1693, %v1694
        %v1696 = vrot.slane %v1609, 4
        %v1697 = vadd.f32 %v1609, %v1696
        %v1698 = vrot.slane %v1697, 2
        %v1699 = vadd.f32 %v1697, %v1698
        %v1700 = vrot.slane %v1699, 1
        %v1701 = vadd.f32 %v1699, %v1700
        %v1702 = vrot.slane %v1614, 4
        %v1703 = vadd.f32 %v1614, %v1702
        %v1704 = vrot.slane %v1703, 2
        %v1705 = vadd.f32 %v1703, %v1704
        %v1706 = vrot.slane %v1705, 1
        %v1707 = vadd.f32 %v1705, %v1706
        %v1708 = vrot.slane %v1619, 4
        %v1709 = vadd.f32 %v1619, %v1708
        %v1710 = vrot.slane %v1709, 2
        %v1711 = vadd.f32 %v1709, %v1710
        %v1712 = vrot.slane %v1711, 1
        %v1713 = vadd.f32 %v1711, %v1712
        %v1714 = vrot.slane %v1624, 4
        %v1715 = vadd.f32 %v1624, %v1714
        %v1716 = vrot.slane %v1715, 2
        %v1717 = vadd.f32 %v1715, %v1716
        %v1718 = vrot.slane %v1717, 1
        %v1719 = vadd.f32 %v1717, %v1718
        %v1720 = vrot.slane %v1629, 4
        %v1721 = vadd.f32 %v1629, %v1720
        %v1722 = vrot.slane %v1721, 2
        %v1723 = vadd.f32 %v1721, %v1722
        %v1724 = vrot.slane %v1723, 1
        %v1725 = vadd.f32 %v1723, %v1724
        %v1726 = vrot.slane %v1634, 4
        %v1727 = vadd.f32 %v1634, %v1726
        %v1728 = vrot.slane %v1727, 2
        %v1729 = vadd.f32 %v1727, %v1728
        %v1730 = vrot.slane %v1729, 1
        %v1731 = vadd.f32 %v1729, %v1730
        %v1732 = vrot.slane %v1639, 4
        %v1733 = vadd.f32 %v1639, %v1732
        %v1734 = vrot.slane %v1733, 2
        %v1735 = vadd.f32 %v1733, %v1734
        %v1736 = vrot.slane %v1735, 1
        %v1737 = vadd.f32 %v1735, %v1736
        %v1738 = vrot.slane %v1644, 4
        %v1739 = vadd.f32 %v1644, %v1738
        %v1740 = vrot.slane %v1739, 2
        %v1741 = vadd.f32 %v1739, %v1740
        %v1742 = vrot.slane %v1741, 1
        %v1743 = vadd.f32 %v1741, %v1742
        %v1744 = vrot.slane %v1649, 4
        %v1745 = vadd.f32 %v1649, %v1744
        %v1746 = vrot.slane %v1745, 2
        %v1747 = vadd.f32 %v1745, %v1746
        %v1748 = vrot.slane %v1747, 1
        %v1749 = vadd.f32 %v1747, %v1748
        %v1750 = vmul.f32 %v1659, %v1166
        %v1751 = vmul.f32 %v1665, %v1166
        %v1752 = vmul.f32 %v1671, %v1166
        %v1753 = vmul.f32 %v1677, %v1166
        %v1754 = vmul.f32 %v1683, %v1166
        %v1755 = vmul.f32 %v1689, %v1166
        %v1756 = vmul.f32 %v1695, %v1166
        %v1757 = vmul.f32 %v1701, %v1166
        %v1758 = vmul.f32 %v1707, %v1166
        %v1759 = vmul.f32 %v1713, %v1166
        %v1760 = vmul.f32 %v1719, %v1166
        %v1761 = vmul.f32 %v1725, %v1166
        %v1762 = vmul.f32 %v1731, %v1166
        %v1763 = vmul.f32 %v1737, %v1166
        %v1764 = vmul.f32 %v1743, %v1166
        %v1765 = vmul.f32 %v1749, %v1166
        %v1766 = vsub.f32 %v1574, %v1750
        %v1767 = vsub.f32 %v1579, %v1751
        %v1768 = vsub.f32 %v1584, %v1752
        %v1769 = vsub.f32 %v1589, %v1753
        %v1770 = vsub.f32 %v1594, %v1754
        %v1771 = vsub.f32 %v1599, %v1755
        %v1772 = vsub.f32 %v1604, %v1756
        %v1773 = vsub.f32 %v1609, %v1757
        %v1774 = vsub.f32 %v1614, %v1758
        %v1775 = vsub.f32 %v1619, %v1759
        %v1776 = vsub.f32 %v1624, %v1760
        %v1777 = vsub.f32 %v1629, %v1761
        %v1778 = vsub.f32 %v1634, %v1762
        %v1779 = vsub.f32 %v1639, %v1763
        %v1780 = vsub.f32 %v1644, %v1764
        %v1781 = vsub.f32 %v1649, %v1765
        %v1782 = vmul.f32 %v1766, %v1766
        %v1783 = vmul.f32 %v1767, %v1767
        %v1784 = vmul.f32 %v1768, %v1768
        %v1785 = vmul.f32 %v1769, %v1769
        %v1786 = vmul.f32 %v1770, %v1770
        %v1787 = vmul.f32 %v1771, %v1771
        %v1788 = vmul.f32 %v1772, %v1772
        %v1789 = vmul.f32 %v1773, %v1773
        %v1790 = vmul.f32 %v1774, %v1774
        %v1791 = vmul.f32 %v1775, %v1775
        %v1792 = vmul.f32 %v1776, %v1776
        %v1793 = vmul.f32 %v1777, %v1777
        %v1794 = vmul.f32 %v1778, %v1778
        %v1795 = vmul.f32 %v1779, %v1779
        %v1796 = vmul.f32 %v1780, %v1780
        %v1797 = vmul.f32 %v1781, %v1781
        %v1798 = vrot.slane %v1782, 4
        %v1799 = vadd.f32 %v1782, %v1798
        %v1800 = vrot.slane %v1799, 2
        %v1801 = vadd.f32 %v1799, %v1800
        %v1802 = vrot.slane %v1801, 1
        %v1803 = vadd.f32 %v1801, %v1802
        %v1804 = vrot.slane %v1783, 4
        %v1805 = vadd.f32 %v1783, %v1804
        %v1806 = vrot.slane %v1805, 2
        %v1807 = vadd.f32 %v1805, %v1806
        %v1808 = vrot.slane %v1807, 1
        %v1809 = vadd.f32 %v1807, %v1808
        %v1810 = vrot.slane %v1784, 4
        %v1811 = vadd.f32 %v1784, %v1810
        %v1812 = vrot.slane %v1811, 2
        %v1813 = vadd.f32 %v1811, %v1812
        %v1814 = vrot.slane %v1813, 1
        %v1815 = vadd.f32 %v1813, %v1814
        %v1816 = vrot.slane %v1785, 4
        %v1817 = vadd.f32 %v1785, %v1816
        %v1818 = vrot.slane %v1817, 2
        %v1819 = vadd.f32 %v1817, %v1818
        %v1820 = vrot.slane %v1819, 1
        %v1821 = vadd.f32 %v1819, %v1820
        %v1822 = vrot.slane %v1786, 4
        %v1823 = vadd.f32 %v1786, %v1822
        %v1824 = vrot.slane %v1823, 2
        %v1825 = vadd.f32 %v1823, %v1824
        %v1826 = vrot.slane %v1825, 1
        %v1827 = vadd.f32 %v1825, %v1826
        %v1828 = vrot.slane %v1787, 4
        %v1829 = vadd.f32 %v1787, %v1828
        %v1830 = vrot.slane %v1829, 2
        %v1831 = vadd.f32 %v1829, %v1830
        %v1832 = vrot.slane %v1831, 1
        %v1833 = vadd.f32 %v1831, %v1832
        %v1834 = vrot.slane %v1788, 4
        %v1835 = vadd.f32 %v1788, %v1834
        %v1836 = vrot.slane %v1835, 2
        %v1837 = vadd.f32 %v1835, %v1836
        %v1838 = vrot.slane %v1837, 1
        %v1839 = vadd.f32 %v1837, %v1838
        %v1840 = vrot.slane %v1789, 4
        %v1841 = vadd.f32 %v1789, %v1840
        %v1842 = vrot.slane %v1841, 2
        %v1843 = vadd.f32 %v1841, %v1842
        %v1844 = vrot.slane %v1843, 1
        %v1845 = vadd.f32 %v1843, %v1844
        %v1846 = vrot.slane %v1790, 4
        %v1847 = vadd.f32 %v1790, %v1846
        %v1848 = vrot.slane %v1847, 2
        %v1849 = vadd.f32 %v1847, %v1848
        %v1850 = vrot.slane %v1849, 1
        %v1851 = vadd.f32 %v1849, %v1850
        %v1852 = vrot.slane %v1791, 4
        %v1853 = vadd.f32 %v1791, %v1852
        %v1854 = vrot.slane %v1853, 2
        %v1855 = vadd.f32 %v1853, %v1854
        %v1856 = vrot.slane %v1855, 1
        %v1857 = vadd.f32 %v1855, %v1856
        %v1858 = vrot.slane %v1792, 4
        %v1859 = vadd.f32 %v1792, %v1858
        %v1860 = vrot.slane %v1859, 2
        %v1861 = vadd.f32 %v1859, %v1860
        %v1862 = vrot.slane %v1861, 1
        %v1863 = vadd.f32 %v1861, %v1862
        %v1864 = vrot.slane %v1793, 4
        %v1865 = vadd.f32 %v1793, %v1864
        %v1866 = vrot.slane %v1865, 2
        %v1867 = vadd.f32 %v1865, %v1866
        %v1868 = vrot.slane %v1867, 1
        %v1869 = vadd.f32 %v1867, %v1868
        %v1870 = vrot.slane %v1794, 4
        %v1871 = vadd.f32 %v1794, %v1870
        %v1872 = vrot.slane %v1871, 2
        %v1873 = vadd.f32 %v1871, %v1872
        %v1874 = vrot.slane %v1873, 1
        %v1875 = vadd.f32 %v1873, %v1874
        %v1876 = vrot.slane %v1795, 4
        %v1877 = vadd.f32 %v1795, %v1876
        %v1878 = vrot.slane %v1877, 2
        %v1879 = vadd.f32 %v1877, %v1878
        %v1880 = vrot.slane %v1879, 1
        %v1881 = vadd.f32 %v1879, %v1880
        %v1882 = vrot.slane %v1796, 4
        %v1883 = vadd.f32 %v1796, %v1882
        %v1884 = vrot.slane %v1883, 2
        %v1885 = vadd.f32 %v1883, %v1884
        %v1886 = vrot.slane %v1885, 1
        %v1887 = vadd.f32 %v1885, %v1886
        %v1888 = vrot.slane %v1797, 4
        %v1889 = vadd.f32 %v1797, %v1888
        %v1890 = vrot.slane %v1889, 2
        %v1891 = vadd.f32 %v1889, %v1890
        %v1892 = vrot.slane %v1891, 1
        %v1893 = vadd.f32 %v1891, %v1892
        %v1894 = vmul.f32 %v1803, %v1166
        %v1895 = vmul.f32 %v1809, %v1166
        %v1896 = vmul.f32 %v1815, %v1166
        %v1897 = vmul.f32 %v1821, %v1166
        %v1898 = vmul.f32 %v1827, %v1166
        %v1899 = vmul.f32 %v1833, %v1166
        %v1900 = vmul.f32 %v1839, %v1166
        %v1901 = vmul.f32 %v1845, %v1166
        %v1902 = vmul.f32 %v1851, %v1166
        %v1903 = vmul.f32 %v1857, %v1166
        %v1904 = vmul.f32 %v1863, %v1166
        %v1905 = vmul.f32 %v1869, %v1166
        %v1906 = vmul.f32 %v1875, %v1166
        %v1907 = vmul.f32 %v1881, %v1166
        %v1908 = vmul.f32 %v1887, %v1166
        %v1909 = vmul.f32 %v1893, %v1166
        %v1910 = vadd.f32 %v1894, 1e-05
        %v1911 = vadd.f32 %v1895, 1e-05
        %v1912 = vadd.f32 %v1896, 1e-05
        %v1913 = vadd.f32 %v1897, 1e-05
        %v1914 = vadd.f32 %v1898, 1e-05
        %v1915 = vadd.f32 %v1899, 1e-05
        %v1916 = vadd.f32 %v1900, 1e-05
        %v1917 = vadd.f32 %v1901, 1e-05
        %v1918 = vadd.f32 %v1902, 1e-05
        %v1919 = vadd.f32 %v1903, 1e-05
        %v1920 = vadd.f32 %v1904, 1e-05
        %v1921 = vadd.f32 %v1905, 1e-05
        %v1922 = vadd.f32 %v1906, 1e-05
        %v1923 = vadd.f32 %v1907, 1e-05
        %v1924 = vadd.f32 %v1908, 1e-05
        %v1925 = vadd.f32 %v1909, 1e-05
        %v1926 = vrsqrt.pop %v1910
        %v1927 = vrsqrt.pop %v1911
        %v1928 = vrsqrt.pop %v1912
        %v1929 = vrsqrt.pop %v1913
        %v1930 = vrsqrt.pop %v1914
        %v1931 = vrsqrt.pop %v1915
        %v1932 = vrsqrt.pop %v1916
        %v1933 = vrsqrt.pop %v1917
        %v1934 = vrsqrt.pop %v1918
        %v1935 = vrsqrt.pop %v1919
        %v1936 = vrsqrt.pop %v1920
        %v1937 = vrsqrt.pop %v1921
        %v1938 = vrsqrt.pop %v1922
        %v1939 = vrsqrt.pop %v1923
        %v1940 = vrsqrt.pop %v1924
        %v1941 = vrsqrt.pop %v1925
        %v1942 = vmul.f32 %v1652, %v1926
        %v1943 = vmul.f32 %v1652, %v1927
        %v1944 = vmul.f32 %v1652, %v1928
        %v1945 = vmul.f32 %v1652, %v1929
        %v1946 = vmul.f32 %v1652, %v1930
        %v1947 = vmul.f32 %v1652, %v1931
        %v1948 = vmul.f32 %v1652, %v1932
        %v1949 = vmul.f32 %v1652, %v1933
        %v1950 = vmul.f32 %v1652, %v1934
        %v1951 = vmul.f32 %v1652, %v1935
        %v1952 = vmul.f32 %v1652, %v1936
        %v1953 = vmul.f32 %v1652, %v1937
        %v1954 = vmul.f32 %v1652, %v1938
        %v1955 = vmul.f32 %v1652, %v1939
        %v1956 = vmul.f32 %v1652, %v1940
        %v1957 = vmul.f32 %v1652, %v1941
        %v1958 = vlaneseq
        %v1959 = vshrl.u32 %v1958, 7
        %v1960 = vsub.s32 0, %v1959
        %v1961 = vrot.slane %v1942, %v1960
        %v1962 = vlaneseq
        %v1963 = vshrl.u32 %v1962, 7
        %v1964 = vsub.s32 0, %v1963
        %v1965 = vrot.slane %v1943, %v1964
        %v1966 = vlaneseq
        %v1967 = vshrl.u32 %v1966, 7
        %v1968 = vsub.s32 0, %v1967
        %v1969 = vrot.slane %v1944, %v1968
        %v1970 = vlaneseq
        %v1971 = vshrl.u32 %v1970, 7
        %v1972 = vsub.s32 0, %v1971
        %v1973 = vrot.slane %v1945, %v1972
        %v1974 = vlaneseq
        %v1975 = vshrl.u32 %v1974, 7
        %v1976 = vsub.s32 0, %v1975
        %v1977 = vrot.slane %v1946, %v1976
        %v1978 = vlaneseq
        %v1979 = vshrl.u32 %v1978, 7
        %v1980 = vsub.s32 0, %v1979
        %v1981 = vrot.slane %v1947, %v1980
        %v1982 = vlaneseq
        %v1983 = vshrl.u32 %v1982, 7
        %v1984 = vsub.s32 0, %v1983
        %v1985 = vrot.slane %v1948, %v1984
        %v1986 = vlaneseq
        %v1987 = vshrl.u32 %v1986, 7
        %v1988 = vsub.s32 0, %v1987
        %v1989 = vrot.slane %v1949, %v1988
        %v1990 = vlaneseq
        %v1991 = vshrl.u32 %v1990, 7
        %v1992 = vsub.s32 0, %v1991
        %v1993 = vrot.slane %v1950, %v1992
        %v1994 = vlaneseq
        %v1995 = vshrl.u32 %v1994, 7
        %v1996 = vsub.s32 0, %v1995
        %v1997 = vrot.slane %v1951, %v1996
        %v1998 = vlaneseq
        %v1999 = vshrl.u32 %v1998, 7
        %v2000 = vsub.s32 0, %v1999
        %v2001 = vrot.slane %v1952, %v2000
        %v2002 = vlaneseq
        %v2003 = vshrl.u32 %v2002, 7
        %v2004 = vsub.s32 0, %v2003
        %v2005 = vrot.slane %v1953, %v2004
        %v2006 = vlaneseq
        %v2007 = vshrl.u32 %v2006, 7
        %v2008 = vsub.s32 0, %v2007
        %v2009 = vrot.slane %v1954, %v2008
        %v2010 = vlaneseq
        %v2011 = vshrl.u32 %v2010, 7
        %v2012 = vsub.s32 0, %v2011
        %v2013 = vrot.slane %v1955, %v2012
        %v2014 = vlaneseq
        %v2015 = vshrl.u32 %v2014, 7
        %v2016 = vsub.s32 0, %v2015
        %v2017 = vrot.slane %v1956, %v2016
        %v2018 = vlaneseq
        %v2019 = vshrl.u32 %v2018, 7
        %v2020 = vsub.s32 0, %v2019
        %v2021 = vrot.slane %v1957, %v2020
        %v2022 = vmul.f32 %v1766, %v1961
        %v2023 = vmul.f32 %v1767, %v1965
        %v2024 = vmul.f32 %v1768, %v1969
        %v2025 = vmul.f32 %v1769, %v1973
        %v2026 = vmul.f32 %v1770, %v1977
        %v2027 = vmul.f32 %v1771, %v1981
        %v2028 = vmul.f32 %v1772, %v1985
        %v2029 = vmul.f32 %v1773, %v1989
        %v2030 = vmul.f32 %v1774, %v1993
        %v2031 = vmul.f32 %v1775, %v1997
        %v2032 = vmul.f32 %v1776, %v2001
        %v2033 = vmul.f32 %v1777, %v2005
        %v2034 = vmul.f32 %v1778, %v2009
        %v2035 = vmul.f32 %v1779, %v2013
        %v2036 = vmul.f32 %v1780, %v2017
        %v2037 = vmul.f32 %v1781, %v2021
        %v2038 = vlaneseq
        %v2039 = vshrl.u32 %v2038, 7
        %v2040 = vsub.s32 0, %v2039
        %v2041 = vrot.slane %v1653, %v2040
        %v2042 = vadd.f32 %v2022, %v2041
        %v2043 = vadd.f32 %v2023, %v2041
        %v2044 = vadd.f32 %v2024, %v2041
        %v2045 = vadd.f32 %v2025, %v2041
        %v2046 = vadd.f32 %v2026, %v2041
        %v2047 = vadd.f32 %v2027, %v2041
        %v2048 = vadd.f32 %v2028, %v2041
        %v2049 = vadd.f32 %v2029, %v2041
        %v2050 = vadd.f32 %v2030, %v2041
        %v2051 = vadd.f32 %v2031, %v2041
        %v2052 = vadd.f32 %v2032, %v2041
        %v2053 = vadd.f32 %v2033, %v2041
        %v2054 = vadd.f32 %v2034, %v2041
        %v2055 = vadd.f32 %v2035, %v2041
        %v2056 = vadd.f32 %v2036, %v2041
        %v2057 = vadd.f32 %v2037, %v2041
        %v2058 = vmax.f32 %v2042, 0.0
        %v2059 = vmax.f32 %v2043, 0.0
        %v2060 = vmax.f32 %v2044, 0.0
        %v2061 = vmax.f32 %v2045, 0.0
        %v2062 = vmax.f32 %v2046, 0.0
        %v2063 = vmax.f32 %v2047, 0.0
        %v2064 = vmax.f32 %v2048, 0.0
        %v2065 = vmax.f32 %v2049, 0.0
        %v2066 = vmax.f32 %v2050, 0.0
        %v2067 = vmax.f32 %v2051, 0.0
        %v2068 = vmax.f32 %v2052, 0.0
        %v2069 = vmax.f32 %v2053, 0.0
        %v2070 = vmax.f32 %v2054, 0.0
        %v2071 = vmax.f32 %v2055, 0.0
        %v2072 = vmax.f32 %v2056, 0.0
        %v2073 = vmax.f32 %v2057, 0.0
        %v2074 = vld [vmem:[%s1 + $0x100] sm:$0xff]
        %v2075 = vld [vmem:[%s1 + $0x108] sm:$0xff]
        %v2076 = vld [vmem:[%s1 + $0x110] sm:$0xff]
        %v2077 = vld [vmem:[%s1 + $0x118] sm:$0xff]
        %v2078 = vld [vmem:[%s1 + $0x120] sm:$0xff]
        %v2079 = vld [vmem:[%s1 + $0x128] sm:$0xff]
        %v2080 = vld [vmem:[%s1 + $0x130] sm:$0xff]
        %v2081 = vld [vmem:[%s1 + $0x138] sm:$0xff]
        %v2082 = vld [vmem:[%s1 + $0x140] sm:$0xff]
        %v2083 = vld [vmem:[%s1 + $0x148] sm:$0xff]
        %v2084 = vld [vmem:[%s1 + $0x150] sm:$0xff]
        %v2085 = vld [vmem:[%s1 + $0x158] sm:$0xff]
        %v2086 = vld [vmem:[%s1 + $0x160] sm:$0xff]
        %v2087 = vld [vmem:[%s1 + $0x168] sm:$0xff]
        %v2088 = vld [vmem:[%s1 + $0x170] sm:$0xff]
        %v2089 = vld [vmem:[%s1 + $0x178] sm:$0xff]
        %2090 = vmatprep.subr.mxu0 0.0
        %2091 = vmatpush1.msra.mxu0 %v2074
        %2092 = vmatprep.subr.mxu0 0.0
        %2093 = vmatpush1.msra.mxu0 %v2075
        %2094 = vmatprep.subr.mxu0 0.0
        %2095 = vmatpush1.msra.mxu0 %v2076
        %2096 = vmatprep.subr.mxu0 0.0
        %2097 = vmatpush1.msra.mxu0 %v2077
        %2098 = vmatprep.subr.mxu0 0.0
        %2099 = vmatpush1.msra.mxu0 %v2078
        %2100 = vmatprep.subr.mxu0 0.0
        %2101 = vmatpush1.msra.mxu0 %v2079
        %2102 = vmatprep.subr.mxu0 0.0
        %2103 = vmatpush1.msra.mxu0 %v2080
        %2104 = vmatprep.subr.mxu0 0.0
        %2105 = vmatpush1.msra.mxu0 %v2081
        %2106 = vmatprep.subr.mxu0 0.0
        %2107 = vmatpush1.msra.mxu0 %v2082
        %2108 = vmatprep.subr.mxu0 0.0
        %2109 = vmatpush1.msra.mxu0 %v2083
        %2110 = vmatprep.subr.mxu0 0.0
        %2111 = vmatpush1.msra.mxu0 %v2084
        %2112 = vmatprep.subr.mxu0 0.0
        %2113 = vmatpush1.msra.mxu0 %v2085
        %2114 = vmatprep.subr.mxu0 0.0
        %2115 = vmatpush1.msra.mxu0 %v2086
        %2116 = vmatprep.subr.mxu0 0.0
        %2117 = vmatpush1.msra.mxu0 %v2087
        %2118 = vmatprep.subr.mxu0 0.0
        %2119 = vmatpush1.msra.mxu0 %v2088
        %2120 = vmatprep.subr.mxu0 0.0
        %2121 = vmatpush1.msra.mxu0 %v2089
        %2122 = vmatprep.subr.mxu0 0.0
        %2123 = vmatpush1.msra.mxu0 0.0
        %2124 = vmatprep.subr.mxu0 0.0
        %2125 = vmatpush1.msra.mxu0 0.0
        %2126 = vmatprep.subr.mxu0 0.0
        %2127 = vmatpush1.msra.mxu0 0.0
        %2128 = vmatprep.subr.mxu0 0.0
        %2129 = vmatpush1.msra.mxu0 0.0
        %2130 = vmatprep.subr.mxu0 0.0
        %2131 = vmatpush1.msra.mxu0 0.0
        %2132 = vmatprep.subr.mxu0 0.0
        %2133 = vmatpush1.msra.mxu0 0.0
        %2134 = vmatprep.subr.mxu0 0.0
        %2135 = vmatpush1.msra.mxu0 0.0
        %2136 = vmatprep.subr.mxu0 0.0
        %2137 = vmatpush1.msra.mxu0 0.0
        %2138 = vmatprep.subr.mxu0 0.0
        %2139 = vmatpush1.msra.mxu0 0.0
        %2140 = vmatprep.subr.mxu0 0.0
        %2141 = vmatpush1.msra.mxu0 0.0
        %2142 = vmatprep.subr.mxu0 0.0
        %2143 = vmatpush1.msra.mxu0 0.0
        %2144 = vmatprep.subr.mxu0 0.0
        %2145 = vmatpush1.msra.mxu0 0.0
        %2146 = vmatprep.subr.mxu0 0.0
        %2147 = vmatpush1.msra.mxu0 0.0
        %2148 = vmatprep.subr.mxu0 0.0
        %2149 = vmatpush1.msra.mxu0 0.0
        %2150 = vmatprep.subr.mxu0 0.0
        %2151 = vmatpush1.msra.mxu0 0.0
        %2152 = vmatprep.subr.mxu0 0.0
        %2153 = vmatpush1.msra.mxu0 0.0
        %2154 = vmatprep.mubr.f32.mxu0 0.0
        %2155 = vmatmul.mubr.f32.gmra.mrb[0].mxu0 %v2058
        %v2156 = vpop.f32.mrb[0].mxu0
        %v2157 = vadd.f32 0.0, %v2156
        %v2158 = vpop.f32.mrb[0].mxu0
        %2159 = vmatprep.mubr.f32.mxu0 0.0
        %2160 = vmatmul.mubr.f32.gmra.mrb[0].mxu0 %v2059
        %v2161 = vpop.f32.mrb[0].mxu0
        %v2162 = vadd.f32 0.0, %v2161
        %v2163 = vpop.f32.mrb[0].mxu0
        %2164 = vmatprep.mubr.f32.mxu0 0.0
        %2165 = vmatmul.mubr.f32.gmra.mrb[0].mxu0 %v2060
        %v2166 = vpop.f32.mrb[0].mxu0
        %v2167 = vadd.f32 0.0, %v2166
        %v2168 = vpop.f32.mrb[0].mxu0
        %2169 = vmatprep.mubr.f32.mxu0 0.0
        %2170 = vmatmul.mubr.f32.gmra.mrb[0].mxu0 %v2061
        %v2171 = vpop.f32.mrb[0].mxu0
        %v2172 = vadd.f32 0.0, %v2171
        %v2173 = vpop.f32.mrb[0].mxu0
        %2174 = vmatprep.mubr.f32.mxu0 0.0
        %2175 = vmatmul.mubr.f32.gmra.mrb[0].mxu0 %v2062
        %v2176 = vpop.f32.mrb[0].mxu0
        %v2177 = vadd.f32 0.0, %v2176
        %v2178 = vpop.f32.mrb[0].mxu0
        %2179 = vmatprep.mubr.f32.mxu0 0.0
        %2180 = vmatmul.mubr.f32.gmra.mrb[0].mxu0 %v2063
        %v2181 = vpop.f32.mrb[0].mxu0
        %v2182 = vadd.f32 0.0, %v2181
        %v2183 = vpop.f32.mrb[0].mxu0
        %2184 = vmatprep.mubr.f32.mxu0 0.0
        %2185 = vmatmul.mubr.f32.gmra.mrb[0].mxu0 %v2064
        %v2186 = vpop.f32.mrb[0].mxu0
        %v2187 = vadd.f32 0.0, %v2186
        %v2188 = vpop.f32.mrb[0].mxu0
        %2189 = vmatprep.mubr.f32.mxu0 0.0
        %2190 = vmatmul.mubr.f32.gmra.mrb[0].mxu0 %v2065
        %v2191 = vpop.f32.mrb[0].mxu0
        %v2192 = vadd.f32 0.0, %v2191
        %v2193 = vpop.f32.mrb[0].mxu0
        %2194 = vmatprep.mubr.f32.mxu0 0.0
        %2195 = vmatmul.mubr.f32.gmra.mrb[0].mxu0 %v2066
        %v2196 = vpop.f32.mrb[0].mxu0
        %v2197 = vadd.f32 0.0, %v2196
        %v2198 = vpop.f32.mrb[0].mxu0
        %2199 = vmatprep.mubr.f32.mxu0 0.0
        %2200 = vmatmul.mubr.f32.gmra.mrb[0].mxu0 %v2067
        %v2201 = vpop.f32.mrb[0].mxu0
        %v2202 = vadd.f32 0.0, %v2201
        %v2203 = vpop.f32.mrb[0].mxu0
        %2204 = vmatprep.mubr.f32.mxu0 0.0
        %2205 = vmatmul.mubr.f32.gmra.mrb[0].mxu0 %v2068
        %v2206 = vpop.f32.mrb[0].mxu0
        %v2207 = vadd.f32 0.0, %v2206
        %v2208 = vpop.f32.mrb[0].mxu0
        %2209 = vmatprep.mubr.f32.mxu0 0.0
        %2210 = vmatmul.mubr.f32.gmra.mrb[0].mxu0 %v2069
        %v2211 = vpop.f32.mrb[0].mxu0
        %v2212 = vadd.f32 0.0, %v2211
        %v2213 = vpop.f32.mrb[0].mxu0
        %2214 = vmatprep.mubr.f32.mxu0 0.0
        %2215 = vmatmul.mubr.f32.gmra.mrb[0].mxu0 %v2070
        %v2216 = vpop.f32.mrb[0].mxu0
        %v2217 = vadd.f32 0.0, %v2216
        %v2218 = vpop.f32.mrb[0].mxu0
        %2219 = vmatprep.mubr.f32.mxu0 0.0
        %2220 = vmatmul.mubr.f32.gmra.mrb[0].mxu0 %v2071
        %v2221 = vpop.f32.mrb[0].mxu0
        %v2222 = vadd.f32 0.0, %v2221
        %v2223 = vpop.f32.mrb[0].mxu0
        %2224 = vmatprep.mubr.f32.mxu0 0.0
        %2225 = vmatmul.mubr.f32.gmra.mrb[0].mxu0 %v2072
        %v2226 = vpop.f32.mrb[0].mxu0
        %v2227 = vadd.f32 0.0, %v2226
        %v2228 = vpop.f32.mrb[0].mxu0
        %2229 = vmatprep.mubr.f32.mxu0 0.0
        %2230 = vmatmul.mubr.f32.gmra.mrb[0].mxu0 %v2073
        %v2231 = vpop.f32.mrb[0].mxu0
        %v2232 = vadd.f32 0.0, %v2231
        %v2233 = vpop.f32.mrb[0].mxu0
        %2234 = vdwg.mxu0
        %v2235 = vld [vmem:[%s2 + $0x4] sm:$0x1]
        %v2236 = vld [vmem:[%s2 + $0x5] sm:$0x1]
        %v2237 = vrot.slane %v2157, 4
        %v2238 = vadd.f32 %v2157, %v2237
        %v2239 = vrot.slane %v2238, 2
        %v2240 = vadd.f32 %v2238, %v2239
        %v2241 = vrot.slane %v2240, 1
        %v2242 = vadd.f32 %v2240, %v2241
        %v2243 = vrot.slane %v2162, 4
        %v2244 = vadd.f32 %v2162, %v2243
        %v2245 = vrot.slane %v2244, 2
        %v2246 = vadd.f32 %v2244, %v2245
        %v2247 = vrot.slane %v2246, 1
        %v2248 = vadd.f32 %v2246, %v2247
        %v2249 = vrot.slane %v2167, 4
        %v2250 = vadd.f32 %v2167, %v2249
        %v2251 = vrot.slane %v2250, 2
        %v2252 = vadd.f32 %v2250, %v2251
        %v2253 = vrot.slane %v2252, 1
        %v2254 = vadd.f32 %v2252, %v2253
        %v2255 = vrot.slane %v2172, 4
        %v2256 = vadd.f32 %v2172, %v2255
        %v2257 = vrot.slane %v2256, 2
        %v2258 = vadd.f32 %v2256, %v2257
        %v2259 = vrot.slane %v2258, 1
        %v2260 = vadd.f32 %v2258, %v2259
        %v2261 = vrot.slane %v2177, 4
        %v2262 = vadd.f32 %v2177, %v2261
        %v2263 = vrot.slane %v2262, 2
        %v2264 = vadd.f32 %v2262, %v2263
        %v2265 = vrot.slane %v2264, 1
        %v2266 = vadd.f32 %v2264, %v2265
        %v2267 = vrot.slane %v2182, 4
        %v2268 = vadd.f32 %v2182, %v2267
        %v2269 = vrot.slane %v2268, 2
        %v2270 = vadd.f32 %v2268, %v2269
        %v2271 = vrot.slane %v2270, 1
        %v2272 = vadd.f32 %v2270, %v2271
        %v2273 = vrot.slane %v2187, 4
        %v2274 = vadd.f32 %v2187, %v2273
        %v2275 = vrot.slane %v2274, 2
        %v2276 = vadd.f32 %v2274, %v2275
        %v2277 = vrot.slane %v2276, 1
        %v2278 = vadd.f32 %v2276, %v2277
        %v2279 = vrot.slane %v2192, 4
        %v2280 = vadd.f32 %v2192, %v2279
        %v2281 = vrot.slane %v2280, 2
        %v2282 = vadd.f32 %v2280, %v2281
        %v2283 = vrot.slane %v2282, 1
        %v2284 = vadd.f32 %v2282, %v2283
        %v2285 = vrot.slane %v2197, 4
        %v2286 = vadd.f32 %v2197, %v2285
        %v2287 = vrot.slane %v2286, 2
        %v2288 = vadd.f32 %v2286, %v2287
        %v2289 = vrot.slane %v2288, 1
        %v2290 = vadd.f32 %v2288, %v2289
        %v2291 = vrot.slane %v2202, 4
        %v2292 = vadd.f32 %v2202, %v2291
        %v2293 = vrot.slane %v2292, 2
        %v2294 = vadd.f32 %v2292, %v2293
        %v2295 = vrot.slane %v2294, 1
        %v2296 = vadd.f32 %v2294, %v2295
        %v2297 = vrot.slane %v2207, 4
        %v2298 = vadd.f32 %v2207, %v2297
        %v2299 = vrot.slane %v2298, 2
        %v2300 = vadd.f32 %v2298, %v2299
        %v2301 = vrot.slane %v2300, 1
        %v2302 = vadd.f32 %v2300, %v2301
        %v2303 = vrot.slane %v2212, 4
        %v2304 = vadd.f32 %v2212, %v2303
        %v2305 = vrot.slane %v2304, 2
        %v2306 = vadd.f32 %v2304, %v2305
        %v2307 = vrot.slane %v2306, 1
        %v2308 = vadd.f32 %v2306, %v2307
        %v2309 = vrot.slane %v2217, 4
        %v2310 = vadd.f32 %v2217, %v2309
        %v2311 = vrot.slane %v2310, 2
        %v2312 = vadd.f32 %v2310, %v2311
        %v2313 = vrot.slane %v2312, 1
        %v2314 = vadd.f32 %v2312, %v2313
        %v2315 = vrot.slane %v2222, 4
        %v2316 = vadd.f32 %v2222, %v2315
        %v2317 = vrot.slane %v2316, 2
        %v2318 = vadd.f32 %v2316, %v2317
        %v2319 = vrot.slane %v2318, 1
        %v2320 = vadd.f32 %v2318, %v2319
        %v2321 = vrot.slane %v2227, 4
        %v2322 = vadd.f32 %v2227, %v2321
        %v2323 = vrot.slane %v2322, 2
        %v2324 = vadd.f32 %v2322, %v2323
        %v2325 = vrot.slane %v2324, 1
        %v2326 = vadd.f32 %v2324, %v2325
        %v2327 = vrot.slane %v2232, 4
        %v2328 = vadd.f32 %v2232, %v2327
        %v2329 = vrot.slane %v2328, 2
        %v2330 = vadd.f32 %v2328, %v2329
        %v2331 = vrot.slane %v2330, 1
        %v2332 = vadd.f32 %v2330, %v2331
        %v2333 = vmul.f32 %v2242, %v1166
        %v2334 = vmul.f32 %v2248, %v1166
        %v2335 = vmul.f32 %v2254, %v1166
        %v2336 = vmul.f32 %v2260, %v1166
        %v2337 = vmul.f32 %v2266, %v1166
        %v2338 = vmul.f32 %v2272, %v1166
        %v2339 = vmul.f32 %v2278, %v1166
        %v2340 = vmul.f32 %v2284, %v1166
        %v2341 = vmul.f32 %v2290, %v1166
        %v2342 = vmul.f32 %v2296, %v1166
        %v2343 = vmul.f32 %v2302, %v1166
        %v2344 = vmul.f32 %v2308, %v1166
        %v2345 = vmul.f32 %v2314, %v1166
        %v2346 = vmul.f32 %v2320, %v1166
        %v2347 = vmul.f32 %v2326, %v1166
        %v2348 = vmul.f32 %v2332, %v1166
        %v2349 = vsub.f32 %v2157, %v2333
        %v2350 = vsub.f32 %v2162, %v2334
        %v2351 = vsub.f32 %v2167, %v2335
        %v2352 = vsub.f32 %v2172, %v2336
        %v2353 = vsub.f32 %v2177, %v2337
        %v2354 = vsub.f32 %v2182, %v2338
        %v2355 = vsub.f32 %v2187, %v2339
        %v2356 = vsub.f32 %v2192, %v2340
        %v2357 = vsub.f32 %v2197, %v2341
        %v2358 = vsub.f32 %v2202, %v2342
        %v2359 = vsub.f32 %v2207, %v2343
        %v2360 = vsub.f32 %v2212, %v2344
        %v2361 = vsub.f32 %v2217, %v2345
        %v2362 = vsub.f32 %v2222, %v2346
        %v2363 = vsub.f32 %v2227, %v2347
        %v2364 = vsub.f32 %v2232, %v2348
        %v2365 = vmul.f32 %v2349, %v2349
        %v2366 = vmul.f32 %v2350, %v2350
        %v2367 = vmul.f32 %v2351, %v2351
        %v2368 = vmul.f32 %v2352, %v2352
        %v2369 = vmul.f32 %v2353, %v2353
        %v2370 = vmul.f32 %v2354, %v2354
        %v2371 = vmul.f32 %v2355, %v2355
        %v2372 = vmul.f32 %v2356, %v2356
        %v2373 = vmul.f32 %v2357, %v2357
        %v2374 = vmul.f32 %v2358, %v2358
        %v2375 = vmul.f32 %v2359, %v2359
        %v2376 = vmul.f32 %v2360, %v2360
        %v2377 = vmul.f32 %v2361, %v2361
        %v2378 = vmul.f32 %v2362, %v2362
        %v2379 = vmul.f32 %v2363, %v2363
        %v2380 = vmul.f32 %v2364, %v2364
        %v2381 = vrot.slane %v2365, 4
        %v2382 = vadd.f32 %v2365, %v2381
        %v2383 = vrot.slane %v2382, 2
        %v2384 = vadd.f32 %v2382, %v2383
        %v2385 = vrot.slane %v2384, 1
        %v2386 = vadd.f32 %v2384, %v2385
        %v2387 = vrot.slane %v2366, 4
        %v2388 = vadd.f32 %v2366, %v2387
        %v2389 = vrot.slane %v2388, 2
        %v2390 = vadd.f32 %v2388, %v2389
        %v2391 = vrot.slane %v2390, 1
        %v2392 = vadd.f32 %v2390, %v2391
        %v2393 = vrot.slane %v2367, 4
        %v2394 = vadd.f32 %v2367, %v2393
        %v2395 = vrot.slane %v2394, 2
        %v2396 = vadd.f32 %v2394, %v2395
        %v2397 = vrot.slane %v2396, 1
        %v2398 = vadd.f32 %v2396, %v2397
        %v2399 = vrot.slane %v2368, 4
        %v2400 = vadd.f32 %v2368, %v2399
        %v2401 = vrot.slane %v2400, 2
        %v2402 = vadd.f32 %v2400, %v2401
        %v2403 = vrot.slane %v2402, 1
        %v2404 = vadd.f32 %v2402, %v2403
        %v2405 = vrot.slane %v2369, 4
        %v2406 = vadd.f32 %v2369, %v2405
        %v2407 = vrot.slane %v2406, 2
        %v2408 = vadd.f32 %v2406, %v2407
        %v2409 = vrot.slane %v2408, 1
        %v2410 = vadd.f32 %v2408, %v2409
        %v2411 = vrot.slane %v2370, 4
        %v2412 = vadd.f32 %v2370, %v2411
        %v2413 = vrot.slane %v2412, 2
        %v2414 = vadd.f32 %v2412, %v2413
        %v2415 = vrot.slane %v2414, 1
        %v2416 = vadd.f32 %v2414, %v2415
        %v2417 = vrot.slane %v2371, 4
        %v2418 = vadd.f32 %v2371, %v2417
        %v2419 = vrot.slane %v2418, 2
        %v2420 = vadd.f32 %v2418, %v2419
        %v2421 = vrot.slane %v2420, 1
        %v2422 = vadd.f32 %v2420, %v2421
        %v2423 = vrot.slane %v2372, 4
        %v2424 = vadd.f32 %v2372, %v2423
        %v2425 = vrot.slane %v2424, 2
        %v2426 = vadd.f32 %v2424, %v2425
        %v2427 = vrot.slane %v2426, 1
        %v2428 = vadd.f32 %v2426, %v2427
        %v2429 = vrot.slane %v2373, 4
        %v2430 = vadd.f32 %v2373, %v2429
        %v2431 = vrot.slane %v2430, 2
        %v2432 = vadd.f32 %v2430, %v2431
        %v2433 = vrot.slane %v2432, 1
        %v2434 = vadd.f32 %v2432, %v2433
        %v2435 = vrot.slane %v2374, 4
        %v2436 = vadd.f32 %v2374, %v2435
        %v2437 = vrot.slane %v2436, 2
        %v2438 = vadd.f32 %v2436, %v2437
        %v2439 = vrot.slane %v2438, 1
        %v2440 = vadd.f32 %v2438, %v2439
        %v2441 = vrot.slane %v2375, 4
        %v2442 = vadd.f32 %v2375, %v2441
        %v2443 = vrot.slane %v2442, 2
        %v2444 = vadd.f32 %v2442, %v2443
        %v2445 = vrot.slane %v2444, 1
        %v2446 = vadd.f32 %v2444, %v2445
        %v2447 = vrot.slane %v2376, 4
        %v2448 = vadd.f32 %v2376, %v2447
        %v2449 = vrot.slane %v2448, 2
        %v2450 = vadd.f32 %v2448, %v2449
        %v2451 = vrot.slane %v2450, 1
        %v2452 = vadd.f32 %v2450, %v2451
        %v2453 = vrot.slane %v2377, 4
        %v2454 = vadd.f32 %v2377, %v2453
        %v2455 = vrot.slane %v2454, 2
        %v2456 = vadd.f32 %v2454, %v2455
        %v2457 = vrot.slane %v2456, 1
        %v2458 = vadd.f32 %v2456, %v2457
        %v2459 = vrot.slane %v2378, 4
        %v2460 = vadd.f32 %v2378, %v2459
        %v2461 = vrot.slane %v2460, 2
        %v2462 = vadd.f32 %v2460, %v2461
        %v2463 = vrot.slane %v2462, 1
        %v2464 = vadd.f32 %v2462, %v2463
        %v2465 = vrot.slane %v2379, 4
        %v2466 = vadd.f32 %v2379, %v2465
        %v2467 = vrot.slane %v2466, 2
        %v2468 = vadd.f32 %v2466, %v2467
        %v2469 = vrot.slane %v2468, 1
        %v2470 = vadd.f32 %v2468, %v2469
        %v2471 = vrot.slane %v2380, 4
        %v2472 = vadd.f32 %v2380, %v2471
        %v2473 = vrot.slane %v2472, 2
        %v2474 = vadd.f32 %v2472, %v2473
        %v2475 = vrot.slane %v2474, 1
        %v2476 = vadd.f32 %v2474, %v2475
        %v2477 = vmul.f32 %v2386, %v1166
        %v2478 = vmul.f32 %v2392, %v1166
        %v2479 = vmul.f32 %v2398, %v1166
        %v2480 = vmul.f32 %v2404, %v1166
        %v2481 = vmul.f32 %v2410, %v1166
        %v2482 = vmul.f32 %v2416, %v1166
        %v2483 = vmul.f32 %v2422, %v1166
        %v2484 = vmul.f32 %v2428, %v1166
        %v2485 = vmul.f32 %v2434, %v1166
        %v2486 = vmul.f32 %v2440, %v1166
        %v2487 = vmul.f32 %v2446, %v1166
        %v2488 = vmul.f32 %v2452, %v1166
        %v2489 = vmul.f32 %v2458, %v1166
        %v2490 = vmul.f32 %v2464, %v1166
        %v2491 = vmul.f32 %v2470, %v1166
        %v2492 = vmul.f32 %v2476, %v1166
        %v2493 = vadd.f32 %v2477, 1e-05
        %v2494 = vadd.f32 %v2478, 1e-05
        %v2495 = vadd.f32 %v2479, 1e-05
        %v2496 = vadd.f32 %v2480, 1e-05
        %v2497 = vadd.f32 %v2481, 1e-05
        %v2498 = vadd.f32 %v2482, 1e-05
        %v2499 = vadd.f32 %v2483, 1e-05
        %v2500 = vadd.f32 %v2484, 1e-05
        %v2501 = vadd.f32 %v2485, 1e-05
        %v2502 = vadd.f32 %v2486, 1e-05
        %v2503 = vadd.f32 %v2487, 1e-05
        %v2504 = vadd.f32 %v2488, 1e-05
        %v2505 = vadd.f32 %v2489, 1e-05
        %v2506 = vadd.f32 %v2490, 1e-05
        %v2507 = vadd.f32 %v2491, 1e-05
        %v2508 = vadd.f32 %v2492, 1e-05
        %v2509 = vrsqrt.pop %v2493
        %v2510 = vrsqrt.pop %v2494
        %v2511 = vrsqrt.pop %v2495
        %v2512 = vrsqrt.pop %v2496
        %v2513 = vrsqrt.pop %v2497
        %v2514 = vrsqrt.pop %v2498
        %v2515 = vrsqrt.pop %v2499
        %v2516 = vrsqrt.pop %v2500
        %v2517 = vrsqrt.pop %v2501
        %v2518 = vrsqrt.pop %v2502
        %v2519 = vrsqrt.pop %v2503
        %v2520 = vrsqrt.pop %v2504
        %v2521 = vrsqrt.pop %v2505
        %v2522 = vrsqrt.pop %v2506
        %v2523 = vrsqrt.pop %v2507
        %v2524 = vrsqrt.pop %v2508
        %v2525 = vmul.f32 %v2235, %v2509
        %v2526 = vmul.f32 %v2235, %v2510
        %v2527 = vmul.f32 %v2235, %v2511
        %v2528 = vmul.f32 %v2235, %v2512
        %v2529 = vmul.f32 %v2235, %v2513
        %v2530 = vmul.f32 %v2235, %v2514
        %v2531 = vmul.f32 %v2235, %v2515
        %v2532 = vmul.f32 %v2235, %v2516
        %v2533 = vmul.f32 %v2235, %v2517
        %v2534 = vmul.f32 %v2235, %v2518
        %v2535 = vmul.f32 %v2235, %v2519
        %v2536 = vmul.f32 %v2235, %v2520
        %v2537 = vmul.f32 %v2235, %v2521
        %v2538 = vmul.f32 %v2235, %v2522
        %v2539 = vmul.f32 %v2235, %v2523
        %v2540 = vmul.f32 %v2235, %v2524
        %v2541 = vlaneseq
        %v2542 = vshrl.u32 %v2541, 7
        %v2543 = vsub.s32 0, %v2542
        %v2544 = vrot.slane %v2525, %v2543
        %v2545 = vlaneseq
        %v2546 = vshrl.u32 %v2545, 7
        %v2547 = vsub.s32 0, %v2546
        %v2548 = vrot.slane %v2526, %v2547
        %v2549 = vlaneseq
        %v2550 = vshrl.u32 %v2549, 7
        %v2551 = vsub.s32 0, %v2550
        %v2552 = vrot.slane %v2527, %v2551
        %v2553 = vlaneseq
        %v2554 = vshrl.u32 %v2553, 7
        %v2555 = vsub.s32 0, %v2554
        %v2556 = vrot.slane %v2528, %v2555
        %v2557 = vlaneseq
        %v2558 = vshrl.u32 %v2557, 7
        %v2559 = vsub.s32 0, %v2558
        %v2560 = vrot.slane %v2529, %v2559
        %v2561 = vlaneseq
        %v2562 = vshrl.u32 %v2561, 7
        %v2563 = vsub.s32 0, %v2562
        %v2564 = vrot.slane %v2530, %v2563
        %v2565 = vlaneseq
        %v2566 = vshrl.u32 %v2565, 7
        %v2567 = vsub.s32 0, %v2566
        %v2568 = vrot.slane %v2531, %v2567
        %v2569 = vlaneseq
        %v2570 = vshrl.u32 %v2569, 7
        %v2571 = vsub.s32 0, %v2570
        %v2572 = vrot.slane %v2532, %v2571
        %v2573 = vlaneseq
        %v2574 = vshrl.u32 %v2573, 7
        %v2575 = vsub.s32 0, %v2574
        %v2576 = vrot.slane %v2533, %v2575
        %v2577 = vlaneseq
        %v2578 = vshrl.u32 %v2577, 7
        %v2579 = vsub.s32 0, %v2578
        %v2580 = vrot.slane %v2534, %v2579
        %v2581 = vlaneseq
        %v2582 = vshrl.u32 %v2581, 7
        %v2583 = vsub.s32 0, %v2582
        %v2584 = vrot.slane %v2535, %v2583
        %v2585 = vlaneseq
        %v2586 = vshrl.u32 %v2585, 7
        %v2587 = vsub.s32 0, %v2586
        %v2588 = vrot.slane %v2536, %v2587
        %v2589 = vlaneseq
        %v2590 = vshrl.u32 %v2589, 7
        %v2591 = vsub.s32 0, %v2590
        %v2592 = vrot.slane %v2537, %v2591
        %v2593 = vlaneseq
        %v2594 = vshrl.u32 %v2593, 7
        %v2595 = vsub.s32 0, %v2594
        %v2596 = vrot.slane %v2538, %v2595
        %v2597 = vlaneseq
        %v2598 = vshrl.u32 %v2597, 7
        %v2599 = vsub.s32 0, %v2598
        %v2600 = vrot.slane %v2539, %v2599
        %v2601 = vlaneseq
        %v2602 = vshrl.u32 %v2601, 7
        %v2603 = vsub.s32 0, %v2602
        %v2604 = vrot.slane %v2540, %v2603
        %v2605 = vmul.f32 %v2349, %v2544
        %v2606 = vmul.f32 %v2350, %v2548
        %v2607 = vmul.f32 %v2351, %v2552
        %v2608 = vmul.f32 %v2352, %v2556
        %v2609 = vmul.f32 %v2353, %v2560
        %v2610 = vmul.f32 %v2354, %v2564
        %v2611 = vmul.f32 %v2355, %v2568
        %v2612 = vmul.f32 %v2356, %v2572
        %v2613 = vmul.f32 %v2357, %v2576
        %v2614 = vmul.f32 %v2358, %v2580
        %v2615 = vmul.f32 %v2359, %v2584
        %v2616 = vmul.f32 %v2360, %v2588
        %v2617 = vmul.f32 %v2361, %v2592
        %v2618 = vmul.f32 %v2362, %v2596
        %v2619 = vmul.f32 %v2363, %v2600
        %v2620 = vmul.f32 %v2364, %v2604
        %v2621 = vlaneseq
        %v2622 = vshrl.u32 %v2621, 7
        %v2623 = vsub.s32 0, %v2622
        %v2624 = vrot.slane %v2236, %v2623
        %v2625 = vadd.f32 %v2605, %v2624
        %v2626 = vadd.f32 %v2606, %v2624
        %v2627 = vadd.f32 %v2607, %v2624
        %v2628 = vadd.f32 %v2608, %v2624
        %v2629 = vadd.f32 %v2609, %v2624
        %v2630 = vadd.f32 %v2610, %v2624
        %v2631 = vadd.f32 %v2611, %v2624
        %v2632 = vadd.f32 %v2612, %v2624
        %v2633 = vadd.f32 %v2613, %v2624
        %v2634 = vadd.f32 %v2614, %v2624
        %v2635 = vadd.f32 %v2615, %v2624
        %v2636 = vadd.f32 %v2616, %v2624
        %v2637 = vadd.f32 %v2617, %v2624
        %v2638 = vadd.f32 %v2618, %v2624
        %v2639 = vadd.f32 %v2619, %v2624
        %v2640 = vadd.f32 %v2620, %v2624
        %v2641 = vmax.f32 %v2625, 0.0
        %v2642 = vmax.f32 %v2626, 0.0
        %v2643 = vmax.f32 %v2627, 0.0
        %v2644 = vmax.f32 %v2628, 0.0
        %v2645 = vmax.f32 %v2629, 0.0
        %v2646 = vmax.f32 %v2630, 0.0
        %v2647 = vmax.f32 %v2631, 0.0
        %v2648 = vmax.f32 %v2632, 0.0
        %v2649 = vmax.f32 %v2633, 0.0
        %v2650 = vmax.f32 %v2634, 0.0
        %v2651 = vmax.f32 %v2635, 0.0
        %v2652 = vmax.f32 %v2636, 0.0
        %v2653 = vmax.f32 %v2637, 0.0
        %v2654 = vmax.f32 %v2638, 0.0
        %v2655 = vmax.f32 %v2639, 0.0
        %v2656 = vmax.f32 %v2640, 0.0
        %v2657 = vld [vmem:[%s1 + $0x180] sm:$0xff]
        %v2658 = vld [vmem:[%s1 + $0x188] sm:$0xff]
        %v2659 = vld [vmem:[%s1 + $0x190] sm:$0xff]
        %v2660 = vld [vmem:[%s1 + $0x198] sm:$0xff]
        %v2661 = vld [vmem:[%s1 + $0x1a0] sm:$0xff]
        %v2662 = vld [vmem:[%s1 + $0x1a8] sm:$0xff]
        %v2663 = vld [vmem:[%s1 + $0x1b0] sm:$0xff]
        %v2664 = vld [vmem:[%s1 + $0x1b8] sm:$0xff]
        %v2665 = vld [vmem:[%s1 + $0x1c0] sm:$0xff]
        %v2666 = vld [vmem:[%s1 + $0x1c8] sm:$0xff]
        %v2667 = vld [vmem:[%s1 + $0x1d0] sm:$0xff]
        %v2668 = vld [vmem:[%s1 + $0x1d8] sm:$0xff]
        %v2669 = vld [vmem:[%s1 + $0x1e0] sm:$0xff]
        %v2670 = vld [vmem:[%s1 + $0x1e8] sm:$0xff]
        %v2671 = vld [vmem:[%s1 + $0x1f0] sm:$0xff]
        %v2672 = vld [vmem:[%s1 + $0x1f8] sm:$0xff]
        %v2673 = vld [vmem:[%s2 + $0x6] sm:$0x1]
        %v2674 = vlaneseq
        %v2675 = vshrl.u32 %v2674, 7
        %v2676 = vsub.s32 0, %v2675
        %v2677 = vrot.slane %v2673, %v2676
        %2678 = vmatprep.subr.mxu0 0.0
        %2679 = vmatpush1.msra.mxu0 %v2657
        %2680 = vmatprep.subr.mxu0 0.0
        %2681 = vmatpush1.msra.mxu0 %v2658
        %2682 = vmatprep.subr.mxu0 0.0
        %2683 = vmatpush1.msra.mxu0 %v2659
        %2684 = vmatprep.subr.mxu0 0.0
        %2685 = vmatpush1.msra.mxu0 %v2660
        %2686 = vmatprep.subr.mxu0 0.0
        %2687 = vmatpush1.msra.mxu0 %v2661
        %2688 = vmatprep.subr.mxu0 0.0
        %2689 = vmatpush1.msra.mxu0 %v2662
        %2690 = vmatprep.subr.mxu0 0.0
        %2691 = vmatpush1.msra.mxu0 %v2663
        %2692 = vmatprep.subr.mxu0 0.0
        %2693 = vmatpush1.msra.mxu0 %v2664
        %2694 = vmatprep.subr.mxu0 0.0
        %2695 = vmatpush1.msra.mxu0 %v2665
        %2696 = vmatprep.subr.mxu0 0.0
        %2697 = vmatpush1.msra.mxu0 %v2666
        %2698 = vmatprep.subr.mxu0 0.0
        %2699 = vmatpush1.msra.mxu0 %v2667
        %2700 = vmatprep.subr.mxu0 0.0
        %2701 = vmatpush1.msra.mxu0 %v2668
        %2702 = vmatprep.subr.mxu0 0.0
        %2703 = vmatpush1.msra.mxu0 %v2669
        %2704 = vmatprep.subr.mxu0 0.0
        %2705 = vmatpush1.msra.mxu0 %v2670
        %2706 = vmatprep.subr.mxu0 0.0
        %2707 = vmatpush1.msra.mxu0 %v2671
        %2708 = vmatprep.subr.mxu0 0.0
        %2709 = vmatpush1.msra.mxu0 %v2672
        %2710 = vmatprep.subr.mxu0 0.0
        %2711 = vmatpush1.msra.mxu0 0.0
        %2712 = vmatprep.subr.mxu0 0.0
        %2713 = vmatpush1.msra.mxu0 0.0
        %2714 = vmatprep.subr.mxu0 0.0
        %2715 = vmatpush1.msra.mxu0 0.0
        %2716 = vmatprep.subr.mxu0 0.0
        %2717 = vmatpush1.msra.mxu0 0.0
        %2718 = vmatprep.subr.mxu0 0.0
        %2719 = vmatpush1.msra.mxu0 0.0
        %2720 = vmatprep.subr.mxu0 0.0
        %2721 = vmatpush1.msra.mxu0 0.0
        %2722 = vmatprep.subr.mxu0 0.0
        %2723 = vmatpush1.msra.mxu0 0.0
        %2724 = vmatprep.subr.mxu0 0.0
        %2725 = vmatpush1.msra.mxu0 0.0
        %2726 = vmatprep.subr.mxu0 0.0
        %2727 = vmatpush1.msra.mxu0 0.0
        %2728 = vmatprep.subr.mxu0 0.0
        %2729 = vmatpush1.msra.mxu0 0.0
        %2730 = vmatprep.subr.mxu0 0.0
        %2731 = vmatpush1.msra.mxu0 0.0
        %2732 = vmatprep.subr.mxu0 0.0
        %2733 = vmatpush1.msra.mxu0 0.0
        %2734 = vmatprep.subr.mxu0 0.0
        %2735 = vmatpush1.msra.mxu0 0.0
        %2736 = vmatprep.subr.mxu0 0.0
        %2737 = vmatpush1.msra.mxu0 0.0
        %2738 = vmatprep.subr.mxu0 0.0
        %2739 = vmatpush1.msra.mxu0 0.0
        %2740 = vmatprep.subr.mxu0 0.0
        %2741 = vmatpush1.msra.mxu0 0.0
        %2742 = vmatprep.mubr.f32.mxu0 0.0
        %2743 = vmatmul.mubr.f32.gmra.mrb[0].mxu0 %v2641
        %v2744 = vpop.f32.mrb[0].mxu0
        %v2745 = vadd.f32 %v2677, %v2744
        %v2746 = vpop.f32.mrb[0].mxu0
        %2747 = vmatprep.mubr.f32.mxu0 0.0
        %2748 = vmatmul.mubr.f32.gmra.mrb[0].mxu0 %v2642
        %v2749 = vpop.f32.mrb[0].mxu0
        %v2750 = vadd.f32 %v2677, %v2749
        %v2751 = vpop.f32.mrb[0].mxu0
        %2752 = vmatprep.mubr.f32.mxu0 0.0
        %2753 = vmatmul.mubr.f32.gmra.mrb[0].mxu0 %v2643
        %v2754 = vpop.f32.mrb[0].mxu0
        %v2755 = vadd.f32 %v2677, %v2754
        %v2756 = vpop.f32.mrb[0].mxu0
        %2757 = vmatprep.mubr.f32.mxu0 0.0
        %2758 = vmatmul.mubr.f32.gmra.mrb[0].mxu0 %v2644
        %v2759 = vpop.f32.mrb[0].mxu0
        %v2760 = vadd.f32 %v2677, %v2759
        %v2761 = vpop.f32.mrb[0].mxu0
        %2762 = vmatprep.mubr.f32.mxu0 0.0
        %2763 = vmatmul.mubr.f32.gmra.mrb[0].mxu0 %v2645
        %v2764 = vpop.f32.mrb[0].mxu0
        %v2765 = vadd.f32 %v2677, %v2764
        %v2766 = vpop.f32.mrb[0].mxu0
        %2767 = vmatprep.mubr.f32.mxu0 0.0
        %2768 = vmatmul.mubr.f32.gmra.mrb[0].mxu0 %v2646
        %v2769 = vpop.f32.mrb[0].mxu0
        %v2770 = vadd.f32 %v2677, %v2769
        %v2771 = vpop.f32.mrb[0].mxu0
        %2772 = vmatprep.mubr.f32.mxu0 0.0
        %2773 = vmatmul.mubr.f32.gmra.mrb[0].mxu0 %v2647
        %v2774 = vpop.f32.mrb[0].mxu0
        %v2775 = vadd.f32 %v2677, %v2774
        %v2776 = vpop.f32.mrb[0].mxu0
        %2777 = vmatprep.mubr.f32.mxu0 0.0
        %2778 = vmatmul.mubr.f32.gmra.mrb[0].mxu0 %v2648
        %v2779 = vpop.f32.mrb[0].mxu0
        %v2780 = vadd.f32 %v2677, %v2779
        %v2781 = vpop.f32.mrb[0].mxu0
        %2782 = vmatprep.mubr.f32.mxu0 0.0
        %2783 = vmatmul.mubr.f32.gmra.mrb[0].mxu0 %v2649
        %v2784 = vpop.f32.mrb[0].mxu0
        %v2785 = vadd.f32 %v2677, %v2784
        %v2786 = vpop.f32.mrb[0].mxu0
        %2787 = vmatprep.mubr.f32.mxu0 0.0
        %2788 = vmatmul.mubr.f32.gmra.mrb[0].mxu0 %v2650
        %v2789 = vpop.f32.mrb[0].mxu0
        %v2790 = vadd.f32 %v2677, %v2789
        %v2791 = vpop.f32.mrb[0].mxu0
        %2792 = vmatprep.mubr.f32.mxu0 0.0
        %2793 = vmatmul.mubr.f32.gmra.mrb[0].mxu0 %v2651
        %v2794 = vpop.f32.mrb[0].mxu0
        %v2795 = vadd.f32 %v2677, %v2794
        %v2796 = vpop.f32.mrb[0].mxu0
        %2797 = vmatprep.mubr.f32.mxu0 0.0
        %2798 = vmatmul.mubr.f32.gmra.mrb[0].mxu0 %v2652
        %v2799 = vpop.f32.mrb[0].mxu0
        %v2800 = vadd.f32 %v2677, %v2799
        %v2801 = vpop.f32.mrb[0].mxu0
        %2802 = vmatprep.mubr.f32.mxu0 0.0
        %2803 = vmatmul.mubr.f32.gmra.mrb[0].mxu0 %v2653
        %v2804 = vpop.f32.mrb[0].mxu0
        %v2805 = vadd.f32 %v2677, %v2804
        %v2806 = vpop.f32.mrb[0].mxu0
        %2807 = vmatprep.mubr.f32.mxu0 0.0
        %2808 = vmatmul.mubr.f32.gmra.mrb[0].mxu0 %v2654
        %v2809 = vpop.f32.mrb[0].mxu0
        %v2810 = vadd.f32 %v2677, %v2809
        %v2811 = vpop.f32.mrb[0].mxu0
        %2812 = vmatprep.mubr.f32.mxu0 0.0
        %2813 = vmatmul.mubr.f32.gmra.mrb[0].mxu0 %v2655
        %v2814 = vpop.f32.mrb[0].mxu0
        %v2815 = vadd.f32 %v2677, %v2814
        %v2816 = vpop.f32.mrb[0].mxu0
        %2817 = vmatprep.mubr.f32.mxu0 0.0
        %2818 = vmatmul.mubr.f32.gmra.mrb[0].mxu0 %v2656
        %v2819 = vpop.f32.mrb[0].mxu0
        %v2820 = vadd.f32 %v2677, %v2819
        %v2821 = vpop.f32.mrb[0].mxu0
        %2822 = vdwg.mxu0
        %2823 = vst [vmem:[%s166] sm:$0xff] %v2745
        %2824 = vst [vmem:[%s166 + $0x8] sm:$0xff] %v2750
        %2825 = vst [vmem:[%s166 + $0x10] sm:$0xff] %v2755
        %2826 = vst [vmem:[%s166 + $0x18] sm:$0xff] %v2760
        %2827 = vst [vmem:[%s166 + $0x20] sm:$0xff] %v2765
        %2828 = vst [vmem:[%s166 + $0x28] sm:$0xff] %v2770
        %2829 = vst [vmem:[%s166 + $0x30] sm:$0xff] %v2775
        %2830 = vst [vmem:[%s166 + $0x38] sm:$0xff] %v2780
        %2831 = vst [vmem:[%s166 + $0x40] sm:$0xff] %v2785
        %2832 = vst [vmem:[%s166 + $0x48] sm:$0xff] %v2790
        %2833 = vst [vmem:[%s166 + $0x50] sm:$0xff] %v2795
        %2834 = vst [vmem:[%s166 + $0x58] sm:$0xff] %v2800
        %2835 = vst [vmem:[%s166 + $0x60] sm:$0xff] %v2805
        %2836 = vst [vmem:[%s166 + $0x68] sm:$0xff] %v2810
        %2837 = vst [vmem:[%s166 + $0x70] sm:$0xff] %v2815
        %2838 = vst [vmem:[%s166 + $0x78] sm:$0xff] %v2820
        %s2839 = sand.u32 %s93, 1
        %s2840 = scalar_lea.sflag [#allocation3], %s2839
        %s2841 = sand.u32 %s93, 1
        %s2842 = smul.addr %s2841, 128
        %s2843 = scalar_lea.vmem [#allocation2], %s2842
        // Predicated region
        $region33: #{tpu_custom_call.1} parent=31 // pred_check
          %p2844 = pneg %p103
        $region34: #{tpu_custom_call.1} parent=31 // pred_check_branch
          %2846 = sbr.rel (%p2844) target = $region36
        $region35: #{tpu_custom_call.1} parent=31 // pred_region
          %s2847 = smul.u32 16, %s17
          %s2849 = ssub.s32 2048, 2048
          %2850 = vsyncadd %s2840, %s2849
          %s2851 = smul.addr %s2847, 128
          %s2852 = scalar_lea.hbm %s3, %s2851
          %s2853 = sshll.u32 %s2843, 4
          %s2854 = int_to_ptr.vmem [resolvable:$true] %s2853
          %2859 = dma.vmem_to_hbm [thread:$0]  %s2854, 2048, %s2852, %s2840, 128, 128, 8
        $region36: #{tpu_custom_call.1} parent=31 // pred_fallthru
          _
      $region32: #{tpu_custom_call.1} parent=5 // pred_fallthru
        _
      %p2860 = scmp.le.s32.totalorder 2, %s12
      // Predicated region
      $region37: #{tpu_custom_call.1} parent=5 // pred_check
        %p2861 = pneg %p2860
      $region38: #{tpu_custom_call.1} parent=5 // pred_check_branch
        %2863 = sbr.rel (%p2861) target = $region40
      $region39: #{tpu_custom_call.1} parent=5 // pred_region
        %s2864 = ssub.s32 %s12, 2
        // Predicated region
        $region41: #{tpu_custom_call.1} parent=39 // pred_check
          %p2865 = pneg %p109
        $region42: #{tpu_custom_call.1} parent=39 // pred_check_branch
          %2867 = sbr.rel (%p2865) target = $region44
        $region43: #{tpu_custom_call.1} parent=39 // pred_region
          %s2868 = sand.u32 %s94, 1
          %s2869 = scalar_lea.sflag [#allocation3], %s2868
          %s2870 = sand.u32 %s94, 1
          %s2871 = smul.addr %s2870, 128
          %s2872 = scalar_lea.vmem [#allocation2], %s2871
          %2873 = dma.done %s2869, 2048
        $region44: #{tpu_custom_call.1} parent=39 // pred_fallthru
          _
      $region40: #{tpu_custom_call.1} parent=5 // pred_fallthru
        _
    $region6: #{tpu_custom_call.1} parent=1 // loop_footer
      %s16 = sadd.s32 1, %s12
    $region7: #{tpu_custom_call.1} parent=1 // loop_footer_branch
      %11 = sbr.rel target = $region3
    $region8: #{tpu_custom_call.1} parent=1 // loop_exit
      _
    %2874 = vsyncpa [#allocation3], 1
    %s2875 = scalar_lea.sflag [#allocation3], 1
    %2876 = vsyncpa %s2875, 1

</llo_original>
